<compile_context>
chip_gen: v7x
topology: tpu7x:2x2x1
jax: 0.10.0
libtpu: 0.0.40
codegen_flags: <defaults>
</compile_context>

<pallas_src>
import functools

import jax
import jax.numpy as jnp
from jax.experimental import pallas as pl
from jax.experimental.pallas import tpu as pltpu


# ---------------------------------------------------------------------------
# Fused Pallas kernel: one grid step per encoder layer, activation VMEM-resident
# ---------------------------------------------------------------------------
def _fused_encoder_kernel(
    x_ref,        # [B*N, D]          node embeddings (f32), read at l==0 only
    wqkv_ref,     # [1, D, 3*H*dk]    packed Wq|Wk|Wv for layer l (bf16)
    wo_ref,       # [1, H*dk, D]      multi_head_combine weight (bf16)
    wff1_ref,     # [1, D, Dff]       FFN layer-1 weight (bf16)
    bff1_ref,     # [1, 1, Dff]       FFN layer-1 bias (f32)
    wff2_ref,     # [1, Dff, D]       FFN layer-2 weight (bf16)
    vecd_ref,     # [1, 6, D]         rows: bo, g1, bt1, b2, g2, bt2 (f32)
    o_ref,        # [B*N, D]          output (f32), written at l==L-1
    x_sc,         # scratch VMEM [B*N, D] f32 — persists across layers
    *, num_layers, batch, nodes, head_num, qkv_dim,
):
    l = pl.program_id(0)
    B, N, D = batch, nodes, x_ref.shape[-1]
    H, dk = head_num, qkv_dim
    HK = H * dk
    BN = B * N
    eps = 1e-5
    scale = 1.0 / (float(dk) ** 0.5)

    # ---- load / init resident activation ---------------------------------
    @pl.when(l == 0)
    def _():
        x_sc[...] = x_ref[...]

    x = x_sc[...]                                   # [BN, D] f32

    wqkv = wqkv_ref[0]                              # [D, 3*HK] bf16
    wo = wo_ref[0]                                  # [HK, D]   bf16
    w1 = wff1_ref[0]                                # [D, Dff]  bf16
    b1 = bff1_ref[0]                                # [1, Dff]  f32
    w2 = wff2_ref[0]                                # [Dff, D]  bf16
    vec = vecd_ref[0]                               # [6, D]    f32
    bo, g1, bt1, b2, g2, bt2 = (vec[i:i + 1, :] for i in range(6))

    # ---- QKV projection: ONE flat MXU matmul -----------------------------
    xb = x.astype(jnp.bfloat16)                                     # single cast
    qkv = jnp.dot(xb, wqkv,
                  preferred_element_type=jnp.float32).astype(jnp.bfloat16)
    qkv3 = qkv.reshape(B, N, 3 * HK)                # major-dim split (cheap)

    # ---- per-head attention (scores/softmax/context are inherently batched)
    ctx_parts = []
    for h in range(H):                              # static unroll, H small
        q_h = qkv3[..., h * dk:(h + 1) * dk]                    # [B, N, dk] bf16
        k_h = qkv3[..., HK + h * dk:HK + (h + 1) * dk]
        v_h = qkv3[..., 2 * HK + h * dk:2 * HK + (h + 1) * dk]

        s = jnp.einsum("bnk,bmk->bnm", q_h, k_h,
                       preferred_element_type=jnp.float32) * scale  # [B, N, N] f32
        s = s - jnp.max(s, axis=-1, keepdims=True)
        e = jnp.exp(s)
        p = e * pl.reciprocal(jnp.sum(e, axis=-1, keepdims=True), approx=True)

        ctx_parts.append(
            jnp.einsum("bnm,bmk->bnk", p.astype(jnp.bfloat16), v_h,
                       preferred_element_type=jnp.float32))          # [B, N, dk]

    # heads contiguous along lanes -> one combine matmul (== concat + Linear)
    ctx = jnp.concatenate(ctx_parts, axis=-1)                        # [B, N, HK] f32
    ctx_flat = ctx.reshape(BN, HK).astype(jnp.bfloat16)              # single cast
    att = jnp.dot(ctx_flat, wo,
                  preferred_element_type=jnp.float32) + bo           # [BN, D] f32

    # ---- Add & InstanceNorm1d (normalize over node axis, per channel) -----
    h1 = (x + att).reshape(B, N, D)
    m1 = jnp.mean(h1, axis=1, keepdims=True)
    v1 = jnp.mean((h1 - m1) ** 2, axis=1, keepdims=True)
    n1 = ((h1 - m1) * jax.lax.rsqrt(v1 + eps) * g1 + bt1).reshape(BN, D)

    # ---- feed-forward: two flat 2-D matmuls --------------------------------
    n1b = n1.astype(jnp.bfloat16)
    f = jnp.maximum(jnp.dot(n1b, w1,
                            preferred_element_type=jnp.float32) + b1, 0.0)
    f2 = jnp.dot(f.astype(jnp.bfloat16), w2,
                 preferred_element_type=jnp.float32) + b2             # [BN, D]

    # ---- Add & InstanceNorm1d (second) -------------------------------------
    h2 = (n1 + f2).reshape(B, N, D)
    m2 = jnp.mean(h2, axis=1, keepdims=True)
    v2 = jnp.mean((h2 - m2) ** 2, axis=1, keepdims=True)
    x_new = ((h2 - m2) * jax.lax.rsqrt(v2 + eps) * g2 + bt2).reshape(BN, D)

    x_sc[...] = x_new

    @pl.when(l == num_layers - 1)
    def _():
        o_ref[...] = x_new.astype(o_ref.dtype)


# ---------------------------------------------------------------------------
# Wrapper: pack weights (bf16) once, run grid over layers
# ---------------------------------------------------------------------------
def encode_all_layers(x, params, *, head_num, qkv_dim):
    """x: [B, N, D] -> [B, N, D]; all layers in one pallas_call, grid=(L,)."""
    B, N, D = x.shape
    L = params["w_qkv"].shape[0]
    H, dk = head_num, qkv_dim
    HK = H * dk
    Dff = params["w_ff1"].shape[-1]
    BN = B * N
    assert params["w_qkv"].shape == (L, 3, H, D, dk)
    assert params["w_o"].shape == (L, H, dk, D)

    # pack Wq|Wk|Wv -> [L, D, 3*H*dk], column order (part, head, dk)
    wqkv = jnp.transpose(params["w_qkv"], (0, 1, 3, 2, 4)).reshape(L, 3, D, HK)
    wqkv = jnp.transpose(wqkv, (0, 2, 1, 3)).reshape(L, D, 3 * HK)
    wqkv = wqkv.astype(jnp.bfloat16)
    wo = params["w_o"].reshape(L, HK, D).astype(jnp.bfloat16)   # head-major rows
    w1 = params["w_ff1"].astype(jnp.bfloat16)                   # [L, D, Dff]
    w2 = params["w_ff2"].astype(jnp.bfloat16)                   # [L, Dff, D]
    b1 = params["b_ff1"]                                        # [L, 1, Dff] f32
    vecd = params["vec_d"]                                      # [L, 6, D]   f32

    x_flat = x.reshape(BN, D).astype(jnp.float32)

    kernel = functools.partial(
        _fused_encoder_kernel,
        num_layers=L, batch=B, nodes=N, head_num=H, qkv_dim=dk)

    out = pl.pallas_call(
        kernel,
        out_shape=jax.ShapeDtypeStruct((BN, D), jnp.float32),
        grid=(L,),
        in_specs=[
            pl.BlockSpec((BN, D), lambda l: (0, 0)),              # x (loaded once)
            pl.BlockSpec((1, D, 3 * HK), lambda l: (l, 0, 0)),    # wqkv
            pl.BlockSpec((1, HK, D), lambda l: (l, 0, 0)),        # wo
            pl.BlockSpec((1, D, Dff), lambda l: (l, 0, 0)),       # w_ff1
            pl.BlockSpec((1, 1, Dff), lambda l: (l, 0, 0)),       # b_ff1
            pl.BlockSpec((1, Dff, D), lambda l: (l, 0, 0)),       # w_ff2
            pl.BlockSpec((1, 6, D), lambda l: (l, 0, 0)),         # vec_d
        ],
        out_specs=pl.BlockSpec((BN, D), lambda l: (0, 0)),
        scratch_shapes=[pltpu.VMEM((BN, D), jnp.float32)],
        compiler_params=pltpu.CompilerParams(
            dimension_semantics=("arbitrary",),      # layer axis is sequential
            vmem_limit_bytes=32 * 1024 * 1024),
    )(x_flat, wqkv, wo, w1, b1, w2, vecd)
    return out.reshape(B, N, D)


# ---------------------------------------------------------------------------
# Parameter construction (deterministic, stacked over layers)
# ---------------------------------------------------------------------------
def init_encoder_params(key, model_params):
    L = model_params["encoder_layer_num"]
    D = model_params["embedding_dim"]
    H = model_params["head_num"]
    dk = model_params["qkv_dim"]
    Dff = model_params["ff_hidden_dim"]
    ks = jax.random.split(key, 6)

    def lin(k, shape, fan_in):
        return jax.random.normal(k, shape, jnp.float32) / jnp.sqrt(jnp.float32(fan_in))

    vec = 0.1 * jax.random.normal(ks[4], (L, 6, D), jnp.float32)
    vec = vec.at[:, 1].add(1.0).at[:, 4].add(1.0)   # norm gains centered at 1
    return {
        "w_qkv": lin(ks[0], (L, 3, H, D, dk), D),
        "w_o":   lin(ks[1], (L, H, dk, D), H * dk),
        "w_ff1": lin(ks[2], (L, D, Dff), D),
        "b_ff1": 0.1 * jax.random.normal(ks[5], (L, 1, Dff), jnp.float32),
        "w_ff2": lin(ks[3], (L, Dff, D), Dff),
        "vec_d": vec,     # rows: bo, g1, bt1, b2, g2, bt2
    }


# ---------------------------------------------------------------------------
# TFJSP_Encoder_GTrans forward (encoder_version = 1)
# ---------------------------------------------------------------------------
def tfjsp_encoder_gtrans_forward(
    params,
    ope_emb, ma_emb, veh_emb,
    proc_time, offload_trans_time, onload_trans_time, offload_trans_time_OV,
    *, head_num, qkv_dim,
):
    n_opes = ope_emb.shape[1]
    n_mas = ma_emb.shape[1]

    # concat ONCE, run all layers on the resident node tensor, split ONCE
    node_emb = jnp.concatenate([ope_emb, ma_emb, veh_emb], axis=1)
    node_out = encode_all_layers(node_emb, params,
                                 head_num=head_num, qkv_dim=qkv_dim)
    ope_out = node_out[:, :n_opes, :]
    ma_out = node_out[:, n_opes:n_opes + n_mas, :]
    veh_out = node_out[:, n_opes + n_mas:, :]

    # encoder_version == 1: no global encoder; time matrices returned as-is.
    return (ope_out, ma_out, veh_out,
            proc_time, onload_trans_time, offload_trans_time_OV)


# ---------------------------------------------------------------------------
# Pure-JAX f32 reference (same math, no Pallas) for validation
# ---------------------------------------------------------------------------
def _reference_encode(x, params, *, head_num, qkv_dim):
    L = params["w_qkv"].shape[0]
    eps = 1e-5
    for l in range(L):
        wq = params["w_qkv"][l, 0]; wk = params["w_qkv"][l, 1]; wv = params["w_qkv"][l, 2]
        wo = params["w_o"][l]; w1 = params["w_ff1"][l]; b1 = params["b_ff1"][l]
        w2 = params["w_ff2"][l]; vec = params["vec_d"][l]
        bo, g1, bt1, b2, g2, bt2 = (vec[i] for i in range(6))

        q = jnp.einsum("bnd,hdk->bhnk", x, wq)
        k = jnp.einsum("bnd,hdk->bhnk", x, wk)
        v = jnp.einsum("bnd,hdk->bhnk", x, wv)
        s = jnp.einsum("bhnk,bhmk->bhnm", q, k) / jnp.sqrt(jnp.float32(qkv_dim))
        p = jax.nn.softmax(s, axis=-1)
        oh = jnp.einsum("bhnm,bhmk->bhnk", p, v)
        att = jnp.einsum("bhnk,hkD->bnD", oh, wo) + bo

        h1 = x + att
        m1 = h1.mean(axis=1, keepdims=True)
        v1 = ((h1 - m1) ** 2).mean(axis=1, keepdims=True)
        n1 = (h1 - m1) * jax.lax.rsqrt(v1 + eps) * g1 + bt1

        f = jax.nn.relu(jnp.einsum("bnd,de->bne", n1, w1) + b1)
        f2 = jnp.einsum("bne,ed->bnd", f, w2) + b2

        h2 = n1 + f2
        m2 = h2.mean(axis=1, keepdims=True)
        v2 = ((h2 - m2) ** 2).mean(axis=1, keepdims=True)
        x = (h2 - m2) * jax.lax.rsqrt(v2 + eps) * g2 + bt2
    return x


# ---------------------------------------------------------------------------
if __name__ == "__main__":
    model_params = dict(
        embedding_dim=32,
        head_num=4,
        qkv_dim=8,
        ff_hidden_dim=64,
        encoder_layer_num=2,
    )
    B, n_opes, n_mas, n_vehs, n_jobs = 2, 8, 4, 4, 4
    D = model_params["embedding_dim"]

    key = jax.random.PRNGKey(0)
    keys = jax.random.split(key, 8)
    ope_emb = jax.random.normal(keys[0], (B, n_opes, D), jnp.float32)
    ma_emb = jax.random.normal(keys[1], (B, n_mas, D), jnp.float32)
    veh_emb = jax.random.normal(keys[2], (B, n_vehs, D), jnp.float32)
    proc_time = jax.random.uniform(keys[3], (B, n_opes, n_mas), jnp.float32)
    offload_trans_time = jax.random.uniform(keys[4], (B, n_vehs, n_mas), jnp.float32)
    onload_trans_time = jax.random.uniform(keys[5], (B, n_mas, n_mas), jnp.float32)
    offload_trans_time_OV = jax.random.uniform(keys[6], (B, n_vehs, n_jobs), jnp.float32)

    params = init_encoder_params(jax.random.PRNGKey(42), model_params)

    outs = tfjsp_encoder_gtrans_forward(
        params,
        ope_emb, ma_emb, veh_emb,
        proc_time, offload_trans_time, onload_trans_time, offload_trans_time_OV,
        head_num=model_params["head_num"],
        qkv_dim=model_params["qkv_dim"],
    )
    outs = jax.block_until_ready(outs)

    # shape sanity checks
    assert outs[0].shape == (B, n_opes, D)
    assert outs[1].shape == (B, n_mas, D)
    assert outs[2].shape == (B, n_vehs, D)
    assert outs[3].shape == (B, n_opes, n_mas)
    assert outs[4].shape == (B, n_mas, n_mas)
    assert outs[5].shape == (B, n_vehs, n_jobs)

    # numerical check vs pure-JAX f32 reference (bf16 matmuls => loose tol)
    node_in = jnp.concatenate([ope_emb, ma_emb, veh_emb], axis=1)
    ref = _reference_encode(node_in, params,
                            head_num=model_params["head_num"],
                            qkv_dim=model_params["qkv_dim"])
    got = jnp.concatenate([outs[0], outs[1], outs[2]], axis=1)
    max_err = float(jnp.max(jnp.abs(got - ref)))
    rel_err = max_err / (float(jnp.max(jnp.abs(ref))) + 1e-6)
    assert max_err < 1e-1, f"max abs error vs reference: {max_err} (rel {rel_err})"

    print("KERNEL_OK")
</pallas_src>

<mosaic_0001>
module attributes {stable_mosaic.version = 11 : i64} {
  func.func @_fused_encoder_kernel(%arg0: i32, %arg1: memref<32x32xf32, #tpu.memory_space<vmem>>, %arg2: memref<1x32x96xbf16, #tpu.memory_space<vmem>>, %arg3: memref<1x32x32xbf16, #tpu.memory_space<vmem>>, %arg4: memref<1x32x64xbf16, #tpu.memory_space<vmem>>, %arg5: memref<1x1x64xf32, #tpu.memory_space<vmem>>, %arg6: memref<1x64x32xbf16, #tpu.memory_space<vmem>>, %arg7: memref<1x6x32xf32, #tpu.memory_space<vmem>>, %arg8: memref<32x32xf32, #tpu.memory_space<vmem>>, %arg9: memref<32x32xf32, #tpu.memory_space<vmem>>) attributes {dimension_semantics = [#tpu.dimension_semantics<arbitrary>], iteration_bounds = array<i64: 2>, scalar_prefetch = 0 : i64, scratch_operands = 1 : i64, tpu.core_type = #tpu.core_type<tc>, window_params = [{pipeline_mode = #tpu.pipeline_mode<synchronous>, transform_indices = @transform_0, window_bounds = array<i64: 32, 32>}, {transform_indices = @transform_1, window_bounds = array<i64: 1, 32, 96>}, {transform_indices = @transform_2, window_bounds = array<i64: 1, 32, 32>}, {transform_indices = @transform_3, window_bounds = array<i64: 1, 32, 64>}, {transform_indices = @transform_4, window_bounds = array<i64: 1, 1, 64>}, {transform_indices = @transform_5, window_bounds = array<i64: 1, 64, 32>}, {transform_indices = @transform_6, window_bounds = array<i64: 1, 6, 32>}, {pipeline_mode = #tpu.pipeline_mode<synchronous>, transform_indices = @transform_7, window_bounds = array<i64: 32, 32>}]} {
    %c0_i32 = arith.constant 0 : i32
    %0 = arith.cmpi eq, %arg0, %c0_i32 : i32
    %1 = arith.extui %0 : i1 to i32
    %c0_i32_0 = arith.constant 0 : i32
    %2 = arith.cmpi ne, %1, %c0_i32_0 : i32
    scf.if %2 {
      %c0_57 = arith.constant 0 : index
      %c0_58 = arith.constant 0 : index
      %172 = vector.load %arg1[%c0_57, %c0_58] : memref<32x32xf32, #tpu.memory_space<vmem>>, vector<32x32xf32>
      %c0_59 = arith.constant 0 : index
      %c0_60 = arith.constant 0 : index
      %173 = vector.load %arg9[%c0_59, %c0_60] : memref<32x32xf32, #tpu.memory_space<vmem>>, vector<32x32xf32>
      tpu.vector_store %arg9[%c0_59, %c0_60], %172 {strides = array<i32>} : memref<32x32xf32, #tpu.memory_space<vmem>>, vector<32x32xf32>,
    } else {
    }
    %c0 = arith.constant 0 : index
    %c0_1 = arith.constant 0 : index
    %3 = vector.load %arg9[%c0, %c0_1] : memref<32x32xf32, #tpu.memory_space<vmem>>, vector<32x32xf32>
    %c0_2 = arith.constant 0 : index
    %c0_3 = arith.constant 0 : index
    %c0_4 = arith.constant 0 : index
    %4 = vector.load %arg2[%c0_2, %c0_3, %c0_4] : memref<1x32x96xbf16, #tpu.memory_space<vmem>>, vector<1x32x96xbf16>
    %5 = vector.shape_cast %4 : vector<1x32x96xbf16> to vector<32x96xbf16>
    %c0_5 = arith.constant 0 : index
    %c0_6 = arith.constant 0 : index
    %c0_7 = arith.constant 0 : index
    %6 = vector.load %arg3[%c0_5, %c0_6, %c0_7] : memref<1x32x32xbf16, #tpu.memory_space<vmem>>, vector<1x32x32xbf16>
    %7 = vector.shape_cast %6 : vector<1x32x32xbf16> to vector<32x32xbf16>
    %c0_8 = arith.constant 0 : index
    %c0_9 = arith.constant 0 : index
    %c0_10 = arith.constant 0 : index
    %8 = vector.load %arg4[%c0_8, %c0_9, %c0_10] : memref<1x32x64xbf16, #tpu.memory_space<vmem>>, vector<1x32x64xbf16>
    %9 = vector.shape_cast %8 : vector<1x32x64xbf16> to vector<32x64xbf16>
    %c0_11 = arith.constant 0 : index
    %c0_12 = arith.constant 0 : index
    %c0_13 = arith.constant 0 : index
    %10 = vector.load %arg5[%c0_11, %c0_12, %c0_13] : memref<1x1x64xf32, #tpu.memory_space<vmem>>, vector<1x1x64xf32>
    %11 = vector.shape_cast %10 : vector<1x1x64xf32> to vector<1x64xf32>
    %c0_14 = arith.constant 0 : index
    %c0_15 = arith.constant 0 : index
    %c0_16 = arith.constant 0 : index
    %12 = vector.load %arg6[%c0_14, %c0_15, %c0_16] : memref<1x64x32xbf16, #tpu.memory_space<vmem>>, vector<1x64x32xbf16>
    %13 = vector.shape_cast %12 : vector<1x64x32xbf16> to vector<64x32xbf16>
    %c0_17 = arith.constant 0 : index
    %c0_18 = arith.constant 0 : index
    %c0_19 = arith.constant 0 : index
    %14 = vector.load %arg7[%c0_17, %c0_18, %c0_19] : memref<1x6x32xf32, #tpu.memory_space<vmem>>, vector<1x6x32xf32>
    %15 = vector.shape_cast %14 : vector<1x6x32xf32> to vector<6x32xf32>
    %16 = vector.extract_strided_slice %15 {offsets = [0, 0], sizes = [1, 32], strides = [1, 1]} : vector<6x32xf32> to vector<1x32xf32>
    %17 = vector.extract_strided_slice %15 {offsets = [1, 0], sizes = [1, 32], strides = [1, 1]} : vector<6x32xf32> to vector<1x32xf32>
    %18 = vector.extract_strided_slice %15 {offsets = [2, 0], sizes = [1, 32], strides = [1, 1]} : vector<6x32xf32> to vector<1x32xf32>
    %19 = vector.extract_strided_slice %15 {offsets = [3, 0], sizes = [1, 32], strides = [1, 1]} : vector<6x32xf32> to vector<1x32xf32>
    %20 = vector.extract_strided_slice %15 {offsets = [4, 0], sizes = [1, 32], strides = [1, 1]} : vector<6x32xf32> to vector<1x32xf32>
    %21 = vector.extract_strided_slice %15 {offsets = [5, 0], sizes = [1, 32], strides = [1, 1]} : vector<6x32xf32> to vector<1x32xf32>
    %22 = arith.truncf %3 : vector<32x32xf32> to vector<32x32xbf16>
    %cst = arith.constant dense<0.000000e+00> : vector<32x96xf32>
    %23 = tpu.matmul %22, %5, %cst {dimension_numbers = #tpu.dot_dimension_numbers<[1], [0], [0], [1], [0, 0, 1, 1], [], []>} : vector<32x32xbf16>, vector<32x96xbf16>, vector<32x96xf32> -> vector<32x96xf32>
    %24 = arith.truncf %23 : vector<32x96xf32> to vector<32x96xbf16>
    %25 = vector.shape_cast %24 : vector<32x96xbf16> to vector<2x16x96xbf16>
    %26 = vector.extract_strided_slice %25 {offsets = [0, 0, 0], sizes = [2, 16, 8], strides = [1, 1, 1]} : vector<2x16x96xbf16> to vector<2x16x8xbf16>
    %27 = vector.extract_strided_slice %25 {offsets = [0, 0, 32], sizes = [2, 16, 8], strides = [1, 1, 1]} : vector<2x16x96xbf16> to vector<2x16x8xbf16>
    %28 = vector.extract_strided_slice %25 {offsets = [0, 0, 64], sizes = [2, 16, 8], strides = [1, 1, 1]} : vector<2x16x96xbf16> to vector<2x16x8xbf16>
    "tpu.trace_start"() <{level = 10 : i32, message = "bnk,bmk->bnm"}> : () -> ()
    %cst_20 = arith.constant dense<0.000000e+00> : vector<2x16x16xf32>
    %29 = tpu.matmul %26, %27, %cst_20 {dimension_numbers = #tpu.dot_dimension_numbers<[2], [2], [1], [1], [0, 0, 0, 1, 1, 1], [0], [0]>} : vector<2x16x8xbf16>, vector<2x16x8xbf16>, vector<2x16x16xf32> -> vector<2x16x16xf32>
    "tpu.trace_stop"() : () -> ()
    %cst_21 = arith.constant 0.353553385 : f32
    %30 = vector.broadcast %cst_21 : f32 to vector<2x16x16xf32>
    %31 = arith.mulf %29, %30 : vector<2x16x16xf32>
    %cst_22 = arith.constant dense<0xFF800000> : vector<2x16xf32>
    %32 = vector.multi_reduction <maximumf>, %31, %cst_22 [2] : vector<2x16x16xf32> to vector<2x16xf32>
    %33 = vector.shape_cast %32 : vector<2x16xf32> to vector<2x16x1xf32>
    %34 = vector.broadcast %33 : vector<2x16x1xf32> to vector<2x16x16xf32>
    %35 = arith.subf %31, %34 : vector<2x16x16xf32>
    %36 = math.exp %35 : vector<2x16x16xf32>
    %cst_23 = arith.constant dense<0.000000e+00> : vector<2x16xf32>
    %37 = vector.multi_reduction <add>, %36, %cst_23 [2] : vector<2x16x16xf32> to vector<2x16xf32>
    %38 = vector.shape_cast %37 : vector<2x16xf32> to vector<2x16x1xf32>
    %39 = tpu.reciprocal %38 {approx = true} : vector<2x16x1xf32> -> vector<2x16x1xf32>
    %40 = vector.broadcast %39 : vector<2x16x1xf32> to vector<2x16x16xf32>
    %41 = arith.mulf %36, %40 : vector<2x16x16xf32>
    %42 = arith.truncf %41 : vector<2x16x16xf32> to vector<2x16x16xbf16>
    "tpu.trace_start"() <{level = 10 : i32, message = "bnm,bmk->bnk"}> : () -> ()
    %cst_24 = arith.constant dense<0.000000e+00> : vector<2x16x8xf32>
    %43 = tpu.matmul %42, %28, %cst_24 {dimension_numbers = #tpu.dot_dimension_numbers<[2], [1], [1], [2], [0, 0, 0, 1, 1, 2], [0], [0]>} : vector<2x16x16xbf16>, vector<2x16x8xbf16>, vector<2x16x8xf32> -> vector<2x16x8xf32>
    "tpu.trace_stop"() : () -> ()
    %44 = vector.extract_strided_slice %25 {offsets = [0, 0, 8], sizes = [2, 16, 8], strides = [1, 1, 1]} : vector<2x16x96xbf16> to vector<2x16x8xbf16>
    %45 = vector.extract_strided_slice %25 {offsets = [0, 0, 40], sizes = [2, 16, 8], strides = [1, 1, 1]} : vector<2x16x96xbf16> to vector<2x16x8xbf16>
    %46 = vector.extract_strided_slice %25 {offsets = [0, 0, 72], sizes = [2, 16, 8], strides = [1, 1, 1]} : vector<2x16x96xbf16> to vector<2x16x8xbf16>
    "tpu.trace_start"() <{level = 10 : i32, message = "bnk,bmk->bnm"}> : () -> ()
    %cst_25 = arith.constant dense<0.000000e+00> : vector<2x16x16xf32>
    %47 = tpu.matmul %44, %45, %cst_25 {dimension_numbers = #tpu.dot_dimension_numbers<[2], [2], [1], [1], [0, 0, 0, 1, 1, 1], [0], [0]>} : vector<2x16x8xbf16>, vector<2x16x8xbf16>, vector<2x16x16xf32> -> vector<2x16x16xf32>
    "tpu.trace_stop"() : () -> ()
    %cst_26 = arith.constant 0.353553385 : f32
    %48 = vector.broadcast %cst_26 : f32 to vector<2x16x16xf32>
    %49 = arith.mulf %47, %48 : vector<2x16x16xf32>
    %cst_27 = arith.constant dense<0xFF800000> : vector<2x16xf32>
    %50 = vector.multi_reduction <maximumf>, %49, %cst_27 [2] : vector<2x16x16xf32> to vector<2x16xf32>
    %51 = vector.shape_cast %50 : vector<2x16xf32> to vector<2x16x1xf32>
    %52 = vector.broadcast %51 : vector<2x16x1xf32> to vector<2x16x16xf32>
    %53 = arith.subf %49, %52 : vector<2x16x16xf32>
    %54 = math.exp %53 : vector<2x16x16xf32>
    %cst_28 = arith.constant dense<0.000000e+00> : vector<2x16xf32>
    %55 = vector.multi_reduction <add>, %54, %cst_28 [2] : vector<2x16x16xf32> to vector<2x16xf32>
    %56 = vector.shape_cast %55 : vector<2x16xf32> to vector<2x16x1xf32>
    %57 = tpu.reciprocal %56 {approx = true} : vector<2x16x1xf32> -> vector<2x16x1xf32>
    %58 = vector.broadcast %57 : vector<2x16x1xf32> to vector<2x16x16xf32>
    %59 = arith.mulf %54, %58 : vector<2x16x16xf32>
    %60 = arith.truncf %59 : vector<2x16x16xf32> to vector<2x16x16xbf16>
    "tpu.trace_start"() <{level = 10 : i32, message = "bnm,bmk->bnk"}> : () -> ()
    %cst_29 = arith.constant dense<0.000000e+00> : vector<2x16x8xf32>
    %61 = tpu.matmul %60, %46, %cst_29 {dimension_numbers = #tpu.dot_dimension_numbers<[2], [1], [1], [2], [0, 0, 0, 1, 1, 2], [0], [0]>} : vector<2x16x16xbf16>, vector<2x16x8xbf16>, vector<2x16x8xf32> -> vector<2x16x8xf32>
    "tpu.trace_stop"() : () -> ()
    %62 = vector.extract_strided_slice %25 {offsets = [0, 0, 16], sizes = [2, 16, 8], strides = [1, 1, 1]} : vector<2x16x96xbf16> to vector<2x16x8xbf16>
    %63 = vector.extract_strided_slice %25 {offsets = [0, 0, 48], sizes = [2, 16, 8], strides = [1, 1, 1]} : vector<2x16x96xbf16> to vector<2x16x8xbf16>
    %64 = vector.extract_strided_slice %25 {offsets = [0, 0, 80], sizes = [2, 16, 8], strides = [1, 1, 1]} : vector<2x16x96xbf16> to vector<2x16x8xbf16>
    "tpu.trace_start"() <{level = 10 : i32, message = "bnk,bmk->bnm"}> : () -> ()
    %cst_30 = arith.constant dense<0.000000e+00> : vector<2x16x16xf32>
    %65 = tpu.matmul %62, %63, %cst_30 {dimension_numbers = #tpu.dot_dimension_numbers<[2], [2], [1], [1], [0, 0, 0, 1, 1, 1], [0], [0]>} : vector<2x16x8xbf16>, vector<2x16x8xbf16>, vector<2x16x16xf32> -> vector<2x16x16xf32>
    "tpu.trace_stop"() : () -> ()
    %cst_31 = arith.constant 0.353553385 : f32
    %66 = vector.broadcast %cst_31 : f32 to vector<2x16x16xf32>
    %67 = arith.mulf %65, %66 : vector<2x16x16xf32>
    %cst_32 = arith.constant dense<0xFF800000> : vector<2x16xf32>
    %68 = vector.multi_reduction <maximumf>, %67, %cst_32 [2] : vector<2x16x16xf32> to vector<2x16xf32>
    %69 = vector.shape_cast %68 : vector<2x16xf32> to vector<2x16x1xf32>
    %70 = vector.broadcast %69 : vector<2x16x1xf32> to vector<2x16x16xf32>
    %71 = arith.subf %67, %70 : vector<2x16x16xf32>
    %72 = math.exp %71 : vector<2x16x16xf32>
    %cst_33 = arith.constant dense<0.000000e+00> : vector<2x16xf32>
    %73 = vector.multi_reduction <add>, %72, %cst_33 [2] : vector<2x16x16xf32> to vector<2x16xf32>
    %74 = vector.shape_cast %73 : vector<2x16xf32> to vector<2x16x1xf32>
    %75 = tpu.reciprocal %74 {approx = true} : vector<2x16x1xf32> -> vector<2x16x1xf32>
    %76 = vector.broadcast %75 : vector<2x16x1xf32> to vector<2x16x16xf32>
    %77 = arith.mulf %72, %76 : vector<2x16x16xf32>
    %78 = arith.truncf %77 : vector<2x16x16xf32> to vector<2x16x16xbf16>
    "tpu.trace_start"() <{level = 10 : i32, message = "bnm,bmk->bnk"}> : () -> ()
    %cst_34 = arith.constant dense<0.000000e+00> : vector<2x16x8xf32>
    %79 = tpu.matmul %78, %64, %cst_34 {dimension_numbers = #tpu.dot_dimension_numbers<[2], [1], [1], [2], [0, 0, 0, 1, 1, 2], [0], [0]>} : vector<2x16x16xbf16>, vector<2x16x8xbf16>, vector<2x16x8xf32> -> vector<2x16x8xf32>
    "tpu.trace_stop"() : () -> ()
    %80 = vector.extract_strided_slice %25 {offsets = [0, 0, 24], sizes = [2, 16, 8], strides = [1, 1, 1]} : vector<2x16x96xbf16> to vector<2x16x8xbf16>
    %81 = vector.extract_strided_slice %25 {offsets = [0, 0, 56], sizes = [2, 16, 8], strides = [1, 1, 1]} : vector<2x16x96xbf16> to vector<2x16x8xbf16>
    %82 = vector.extract_strided_slice %25 {offsets = [0, 0, 88], sizes = [2, 16, 8], strides = [1, 1, 1]} : vector<2x16x96xbf16> to vector<2x16x8xbf16>
    "tpu.trace_start"() <{level = 10 : i32, message = "bnk,bmk->bnm"}> : () -> ()
    %cst_35 = arith.constant dense<0.000000e+00> : vector<2x16x16xf32>
    %83 = tpu.matmul %80, %81, %cst_35 {dimension_numbers = #tpu.dot_dimension_numbers<[2], [2], [1], [1], [0, 0, 0, 1, 1, 1], [0], [0]>} : vector<2x16x8xbf16>, vector<2x16x8xbf16>, vector<2x16x16xf32> -> vector<2x16x16xf32>
    "tpu.trace_stop"() : () -> ()
    %cst_36 = arith.constant 0.353553385 : f32
    %84 = vector.broadcast %cst_36 : f32 to vector<2x16x16xf32>
    %85 = arith.mulf %83, %84 : vector<2x16x16xf32>
    %cst_37 = arith.constant dense<0xFF800000> : vector<2x16xf32>
    %86 = vector.multi_reduction <maximumf>, %85, %cst_37 [2] : vector<2x16x16xf32> to vector<2x16xf32>
    %87 = vector.shape_cast %86 : vector<2x16xf32> to vector<2x16x1xf32>
    %88 = vector.broadcast %87 : vector<2x16x1xf32> to vector<2x16x16xf32>
    %89 = arith.subf %85, %88 : vector<2x16x16xf32>
    %90 = math.exp %89 : vector<2x16x16xf32>
    %cst_38 = arith.constant dense<0.000000e+00> : vector<2x16xf32>
    %91 = vector.multi_reduction <add>, %90, %cst_38 [2] : vector<2x16x16xf32> to vector<2x16xf32>
    %92 = vector.shape_cast %91 : vector<2x16xf32> to vector<2x16x1xf32>
    %93 = tpu.reciprocal %92 {approx = true} : vector<2x16x1xf32> -> vector<2x16x1xf32>
    %94 = vector.broadcast %93 : vector<2x16x1xf32> to vector<2x16x16xf32>
    %95 = arith.mulf %90, %94 : vector<2x16x16xf32>
    %96 = arith.truncf %95 : vector<2x16x16xf32> to vector<2x16x16xbf16>
    "tpu.trace_start"() <{level = 10 : i32, message = "bnm,bmk->bnk"}> : () -> ()
    %cst_39 = arith.constant dense<0.000000e+00> : vector<2x16x8xf32>
    %97 = tpu.matmul %96, %82, %cst_39 {dimension_numbers = #tpu.dot_dimension_numbers<[2], [1], [1], [2], [0, 0, 0, 1, 1, 2], [0], [0]>} : vector<2x16x16xbf16>, vector<2x16x8xbf16>, vector<2x16x8xf32> -> vector<2x16x8xf32>
    "tpu.trace_stop"() : () -> ()
    %98 = tpu.concatenate %43, %61, %79, %97 in 2 : vector<2x16x8xf32>, vector<2x16x8xf32>, vector<2x16x8xf32>, vector<2x16x8xf32> -> vector<2x16x32xf32>
    %99 = vector.shape_cast %98 : vector<2x16x32xf32> to vector<32x32xf32>
    %100 = arith.truncf %99 : vector<32x32xf32> to vector<32x32xbf16>
    %cst_40 = arith.constant dense<0.000000e+00> : vector<32x32xf32>
    %101 = tpu.matmul %100, %7, %cst_40 {dimension_numbers = #tpu.dot_dimension_numbers<[1], [0], [0], [1], [0, 0, 1, 1], [], []>} : vector<32x32xbf16>, vector<32x32xbf16>, vector<32x32xf32> -> vector<32x32xf32>
    %102 = vector.broadcast %16 : vector<1x32xf32> to vector<32x32xf32>
    %103 = arith.addf %101, %102 : vector<32x32xf32>
    %104 = arith.addf %3, %103 : vector<32x32xf32>
    %105 = vector.shape_cast %104 : vector<32x32xf32> to vector<2x16x32xf32>
    %cst_41 = arith.constant dense<0.000000e+00> : vector<2x32xf32>
    %106 = vector.multi_reduction <add>, %105, %cst_41 [1] : vector<2x16x32xf32> to vector<2x32xf32>
    %107 = vector.shape_cast %106 : vector<2x32xf32> to vector<2x1x32xf32>
    %cst_42 = arith.constant 1.600000e+01 : f32
    %108 = vector.broadcast %cst_42 : f32 to vector<2x1x32xf32>
    %109 = arith.divf %107, %108 : vector<2x1x32xf32>
    %110 = vector.broadcast %109 : vector<2x1x32xf32> to vector<2x16x32xf32>
    %111 = arith.subf %105, %110 : vector<2x16x32xf32>
    %112 = arith.mulf %111, %111 : vector<2x16x32xf32>
    %cst_43 = arith.constant dense<0.000000e+00> : vector<2x32xf32>
    %113 = vector.multi_reduction <add>, %112, %cst_43 [1] : vector<2x16x32xf32> to vector<2x32xf32>
    %114 = vector.shape_cast %113 : vector<2x32xf32> to vector<2x1x32xf32>
    %cst_44 = arith.constant 1.600000e+01 : f32
    %115 = vector.broadcast %cst_44 : f32 to vector<2x1x32xf32>
    %116 = arith.divf %114, %115 : vector<2x1x32xf32>
    %117 = vector.broadcast %109 : vector<2x1x32xf32> to vector<2x16x32xf32>
    %118 = arith.subf %105, %117 : vector<2x16x32xf32>
    %cst_45 = arith.constant 9.99999974E-6 : f32
    %119 = vector.broadcast %cst_45 : f32 to vector<2x1x32xf32>
    %120 = arith.addf %116, %119 : vector<2x1x32xf32>
    %121 = math.rsqrt %120 : vector<2x1x32xf32>
    %122 = vector.broadcast %121 : vector<2x1x32xf32> to vector<2x16x32xf32>
    %123 = arith.mulf %118, %122 : vector<2x16x32xf32>
    %124 = vector.shape_cast %17 : vector<1x32xf32> to vector<1x1x32xf32>
    %125 = vector.broadcast %124 : vector<1x1x32xf32> to vector<2x16x32xf32>
    %126 = arith.mulf %123, %125 : vector<2x16x32xf32>
    %127 = vector.shape_cast %18 : vector<1x32xf32> to vector<1x1x32xf32>
    %128 = vector.broadcast %127 : vector<1x1x32xf32> to vector<2x16x32xf32>
    %129 = arith.addf %126, %128 : vector<2x16x32xf32>
    %130 = vector.shape_cast %129 : vector<2x16x32xf32> to vector<32x32xf32>
    %131 = arith.truncf %130 : vector<32x32xf32> to vector<32x32xbf16>
    %cst_46 = arith.constant dense<0.000000e+00> : vector<32x64xf32>
    %132 = tpu.matmul %131, %9, %cst_46 {dimension_numbers = #tpu.dot_dimension_numbers<[1], [0], [0], [1], [0, 0, 1, 1], [], []>} : vector<32x32xbf16>, vector<32x64xbf16>, vector<32x64xf32> -> vector<32x64xf32>
    %133 = vector.broadcast %11 : vector<1x64xf32> to vector<32x64xf32>
    %134 = arith.addf %132, %133 : vector<32x64xf32>
    %cst_47 = arith.constant 0.000000e+00 : f32
    %135 = vector.broadcast %cst_47 : f32 to vector<32x64xf32>
    %136 = arith.maximumf %134, %135 : vector<32x64xf32>
    %137 = arith.truncf %136 : vector<32x64xf32> to vector<32x64xbf16>
    %cst_48 = arith.constant dense<0.000000e+00> : vector<32x32xf32>
    %138 = tpu.matmul %137, %13, %cst_48 {dimension_numbers = #tpu.dot_dimension_numbers<[1], [0], [0], [1], [0, 0, 1, 1], [], []>} : vector<32x64xbf16>, vector<64x32xbf16>, vector<32x32xf32> -> vector<32x32xf32>
    %139 = vector.broadcast %19 : vector<1x32xf32> to vector<32x32xf32>
    %140 = arith.addf %138, %139 : vector<32x32xf32>
    %141 = arith.addf %130, %140 : vector<32x32xf32>
    %142 = vector.shape_cast %141 : vector<32x32xf32> to vector<2x16x32xf32>
    %cst_49 = arith.constant dense<0.000000e+00> : vector<2x32xf32>
    %143 = vector.multi_reduction <add>, %142, %cst_49 [1] : vector<2x16x32xf32> to vector<2x32xf32>
    %144 = vector.shape_cast %143 : vector<2x32xf32> to vector<2x1x32xf32>
    %cst_50 = arith.constant 1.600000e+01 : f32
    %145 = vector.broadcast %cst_50 : f32 to vector<2x1x32xf32>
    %146 = arith.divf %144, %145 : vector<2x1x32xf32>
    %147 = vector.broadcast %146 : vector<2x1x32xf32> to vector<2x16x32xf32>
    %148 = arith.subf %142, %147 : vector<2x16x32xf32>
    %149 = arith.mulf %148, %148 : vector<2x16x32xf32>
    %cst_51 = arith.constant dense<0.000000e+00> : vector<2x32xf32>
    %150 = vector.multi_reduction <add>, %149, %cst_51 [1] : vector<2x16x32xf32> to vector<2x32xf32>
    %151 = vector.shape_cast %150 : vector<2x32xf32> to vector<2x1x32xf32>
    %cst_52 = arith.constant 1.600000e+01 : f32
    %152 = vector.broadcast %cst_52 : f32 to vector<2x1x32xf32>
    %153 = arith.divf %151, %152 : vector<2x1x32xf32>
    %154 = vector.broadcast %146 : vector<2x1x32xf32> to vector<2x16x32xf32>
    %155 = arith.subf %142, %154 : vector<2x16x32xf32>
    %cst_53 = arith.constant 9.99999974E-6 : f32
    %156 = vector.broadcast %cst_53 : f32 to vector<2x1x32xf32>
    %157 = arith.addf %153, %156 : vector<2x1x32xf32>
    %158 = math.rsqrt %157 : vector<2x1x32xf32>
    %159 = vector.broadcast %158 : vector<2x1x32xf32> to vector<2x16x32xf32>
    %160 = arith.mulf %155, %159 : vector<2x16x32xf32>
    %161 = vector.shape_cast %20 : vector<1x32xf32> to vector<1x1x32xf32>
    %162 = vector.broadcast %161 : vector<1x1x32xf32> to vector<2x16x32xf32>
    %163 = arith.mulf %160, %162 : vector<2x16x32xf32>
    %164 = vector.shape_cast %21 : vector<1x32xf32> to vector<1x1x32xf32>
    %165 = vector.broadcast %164 : vector<1x1x32xf32> to vector<2x16x32xf32>
    %166 = arith.addf %163, %165 : vector<2x16x32xf32>
    %167 = vector.shape_cast %166 : vector<2x16x32xf32> to vector<32x32xf32>
    %c0_54 = arith.constant 0 : index
    %c0_55 = arith.constant 0 : index
    %168 = vector.load %arg9[%c0_54, %c0_55] : memref<32x32xf32, #tpu.memory_space<vmem>>, vector<32x32xf32>
    tpu.vector_store %arg9[%c0_54, %c0_55], %167 {strides = array<i32>} : memref<32x32xf32, #tpu.memory_space<vmem>>, vector<32x32xf32>,
    %c1_i32 = arith.constant 1 : i32
    %169 = arith.cmpi eq, %arg0, %c1_i32 : i32
    %170 = arith.extui %169 : i1 to i32
    %c0_i32_56 = arith.constant 0 : i32
    %171 = arith.cmpi ne, %170, %c0_i32_56 : i32
    scf.if %171 {
      %c0_57 = arith.constant 0 : index
      %c0_58 = arith.constant 0 : index
      %172 = vector.load %arg8[%c0_57, %c0_58] : memref<32x32xf32, #tpu.memory_space<vmem>>, vector<32x32xf32>
      tpu.vector_store %arg8[%c0_57, %c0_58], %167 {strides = array<i32>} : memref<32x32xf32, #tpu.memory_space<vmem>>, vector<32x32xf32>,
    } else {
    }
    return
  }
  func.func @transform_0(%arg0: i32) -> (i32, i32) {
    %c0_i32 = arith.constant 0 : i32
    %c0_i32_0 = arith.constant 0 : i32
    %c0_i32_1 = arith.constant 0 : i32
    return %c0_i32, %c0_i32_0 : i32, i32
  }
  func.func @transform_1(%arg0: i32) -> (i32, i32, i32) {
    %c0_i32 = arith.constant 0 : i32
    %c0_i32_0 = arith.constant 0 : i32
    %c0_i32_1 = arith.constant 0 : i32
    return %arg0, %c0_i32, %c0_i32_0 : i32, i32, i32
  }
  func.func @transform_2(%arg0: i32) -> (i32, i32, i32) {
    %c0_i32 = arith.constant 0 : i32
    %c0_i32_0 = arith.constant 0 : i32
    %c0_i32_1 = arith.constant 0 : i32
    return %arg0, %c0_i32, %c0_i32_0 : i32, i32, i32
  }
  func.func @transform_3(%arg0: i32) -> (i32, i32, i32) {
    %c0_i32 = arith.constant 0 : i32
    %c0_i32_0 = arith.constant 0 : i32
    %c0_i32_1 = arith.constant 0 : i32
    return %arg0, %c0_i32, %c0_i32_0 : i32, i32, i32
  }
  func.func @transform_4(%arg0: i32) -> (i32, i32, i32) {
    %c0_i32 = arith.constant 0 : i32
    %c0_i32_0 = arith.constant 0 : i32
    %c0_i32_1 = arith.constant 0 : i32
    return %arg0, %c0_i32, %c0_i32_0 : i32, i32, i32
  }
  func.func @transform_5(%arg0: i32) -> (i32, i32, i32) {
    %c0_i32 = arith.constant 0 : i32
    %c0_i32_0 = arith.constant 0 : i32
    %c0_i32_1 = arith.constant 0 : i32
    return %arg0, %c0_i32, %c0_i32_0 : i32, i32, i32
  }
  func.func @transform_6(%arg0: i32) -> (i32, i32, i32) {
    %c0_i32 = arith.constant 0 : i32
    %c0_i32_0 = arith.constant 0 : i32
    %c0_i32_1 = arith.constant 0 : i32
    return %arg0, %c0_i32, %c0_i32_0 : i32, i32, i32
  }
  func.func @transform_7(%arg0: i32) -> (i32, i32) {
    %c0_i32 = arith.constant 0 : i32
    %c0_i32_0 = arith.constant 0 : i32
    %c0_i32_1 = arith.constant 0 : i32
    return %c0_i32, %c0_i32_0 : i32, i32
  }
}

</mosaic_0001>

<llo_original>
// kernel: tpu_custom_call.1
$region0: #{tpu_custom_call.1}
  #allocation0 [shape = 'u32[]', space=smem, size = 0x4, offset = 0x4, fixed_abs, tag = 'smem constant byte address 0x4 - core index']
  #allocation1 [shape = 'u32[144,128]{1,0:T(1,128)}', space=vmem, size = 0x12000, scoped, tag = 'internal scratch']
  #allocation2 [shape = 'f32[32,32]{1,0:T(8,128)}', space=vmem, size = 0x4000, scoped, tag = 'scratch operand']
  %s0 = inlined_call_operand.vmem [shape: f32[32,32], index: 0, kind: input, shape index: {}]
  %s1 = inlined_call_operand.vmem [shape: bf16[2,32,96], index: 1, kind: input, shape index: {}]
  %s2 = inlined_call_operand.vmem [shape: bf16[2,32,32], index: 2, kind: input, shape index: {}]
  %s3 = inlined_call_operand.hbm [shape: bf16[2,32,64], index: 3, kind: input, shape index: {}]
  %s4 = inlined_call_operand.vmem [shape: f32[2,1,64], index: 4, kind: input, shape index: {}]
  %s5 = inlined_call_operand.vmem [shape: bf16[2,64,32], index: 5, kind: input, shape index: {}]
  %s6 = inlined_call_operand.vmem [shape: f32[2,6,32], index: 6, kind: input, shape index: {}]
  %s7 = inlined_call_operand.hbm [shape: f32[32,32], index: 7, kind: output, shape index: {}]
  %s8 = sld [smem:[#allocation0]]
  $region73: #{tpu_custom_call.1} parent=0
    _
  %s10 = ssub.s32 1, %s8
  %s11 = scalar_select 0, %s10, %s8
  $region1: #{tpu_custom_call.1} parent=0
    #allocation3 [shape = 'u8[16384]{0}', space=vmem, size = 0x4000, scoped, tag = 'input window, operand 3']
    #allocation4 [shape = 's32[2]{0}', space=sflag, size = 0x8, scoped, tag = 'scoped memory for tpu_custom_call.1']
    #allocation5 [shape = 's32[2]{0}', space=sflag, size = 0x8, scoped, tag = 'scoped memory for tpu_custom_call.1']
    #allocation6 [shape = 'u8[16384]{0}', space=vmem, size = 0x4000, scoped, tag = 'output window, operand 0, single buffered']
    %12 = vsyncpa [#allocation4], 0
    %s13 = scalar_lea.sflag [#allocation4], 1
    %14 = vsyncpa %s13, 0
    %15 = vsyncpa [#allocation5], 0
    loop: start=0, step=1, limit=4
    $region2: #{tpu_custom_call.1} parent=1 // loop_pre_header
      _
    $region3: #{tpu_custom_call.1} parent=1 // loop_header
      %s17 = sphi 0, %s21
      %p18 = scmp.ge.s32.totalorder %s17, 4
      %s25 = sphi 0, %s25
      %s27 = sphi 0, %s25
      %s28 = sphi 0, %s27
      %s42 = sphi 0, %s28
      %s48 = sphi 0, %s50
      %s51 = sphi 0, %s48
      %s52 = sphi 0, %s51
      %s68 = sphi 0, %s52
      %s74 = sphi 0, %s76
      %s77 = sphi 0, %s74
      %s78 = sphi 0, %s77
      %s94 = sphi 0, %s78
      %s100 = sphi 0, %s102
      %s103 = sphi 0, %s100
      %s104 = sphi 0, %s103
      %s120 = sphi 0, %s104
      %s126 = sphi 0, %s128
      %s129 = sphi 0, %s126
      %s130 = sphi 0, %s129
      %s146 = sphi 0, %s130
      %s152 = sphi 0, %s154
      %s155 = sphi 0, %s152
      %s156 = sphi 0, %s155
      %s172 = sphi 0, %s156
      %s178 = sphi 0, %s180
      %s181 = sphi 0, %s178
      %s182 = sphi 0, %s181
      %s198 = sphi 0, %s182
      %s202 = sphi 0, %s202
      %s204 = sphi 0, %s202
      %s205 = sphi 0, %s204
      %s219 = sphi 0, %s205
    $region4: #{tpu_custom_call.1} parent=1 // loop_header_branch
      %20 = sbr.rel (%p18) target = $region8
    $region5: #{tpu_custom_call.1} parent=1 // loop_body
      %s22 = ssub.s32 %s17, 1
      %s23 = ssub.s32 %s17, 2
      %s24 = sadd.s32 %s17, 1
      %s26 = sadd.s32 %s25, 1
      %p29 = scmp.eq.s32.totalorder %s17, 1
      %p30 = scmp.ne.s32.totalorder %s25, %s27
      %p31 = scmp.eq.s32.totalorder %s17, 0
      %p32 = por %p30, %p31
      %p33 = scmp.ne.s32.totalorder %s25, %s27
      %p34 = scmp.eq.s32.totalorder %s22, 1
      %p35 = por %p33, %p34
      %p36 = scmp.ne.s32.totalorder %s27, %s28
      %p37 = scmp.eq.s32.totalorder %s22, 0
      %p38 = por %p36, %p37
      %p39 = scmp.ne.s32.totalorder %s27, %s28
      %p40 = scmp.eq.s32.totalorder %s23, 1
      %p41 = por %p39, %p40
      %p43 = scmp.ne.s32.totalorder %s28, %s42
      %p44 = scmp.eq.s32.totalorder %s23, 0
      %p45 = por %p43, %p44
      %s46 = ssub.s32 %s17, %s24
      %p47 = scmp.eq.s32.totalorder %s46, 0
      %s49 = sadd.s32 %s48, 1
      %s50 = scalar_select %p47, %s48, %s49
      %p53 = pneg %p47
      %p54 = scmp.eq.s32.totalorder %s17, 1
      %p55 = por %p53, %p54
      %p56 = scmp.ne.s32.totalorder %s48, %s51
      %p57 = scmp.eq.s32.totalorder %s17, 0
      %p58 = por %p56, %p57
      %p59 = scmp.ne.s32.totalorder %s48, %s51
      %p60 = scmp.eq.s32.totalorder %s22, 1
      %p61 = por %p59, %p60
      %p62 = scmp.ne.s32.totalorder %s51, %s52
      %p63 = scmp.eq.s32.totalorder %s22, 0
      %p64 = por %p62, %p63
      %p65 = scmp.ne.s32.totalorder %s51, %s52
      %p66 = scmp.eq.s32.totalorder %s23, 1
      %p67 = por %p65, %p66
      %p69 = scmp.ne.s32.totalorder %s52, %s68
      %p70 = scmp.eq.s32.totalorder %s23, 0
      %p71 = por %p69, %p70
      %s72 = ssub.s32 %s17, %s24
      %p73 = scmp.eq.s32.totalorder %s72, 0
      %s75 = sadd.s32 %s74, 1
      %s76 = scalar_select %p73, %s74, %s75
      %p79 = pneg %p73
      %p80 = scmp.eq.s32.totalorder %s17, 1
      %p81 = por %p79, %p80
      %p82 = scmp.ne.s32.totalorder %s74, %s77
      %p83 = scmp.eq.s32.totalorder %s17, 0
      %p84 = por %p82, %p83
      %p85 = scmp.ne.s32.totalorder %s74, %s77
      %p86 = scmp.eq.s32.totalorder %s22, 1
      %p87 = por %p85, %p86
      %p88 = scmp.ne.s32.totalorder %s77, %s78
      %p89 = scmp.eq.s32.totalorder %s22, 0
      %p90 = por %p88, %p89
      %p91 = scmp.ne.s32.totalorder %s77, %s78
      %p92 = scmp.eq.s32.totalorder %s23, 1
      %p93 = por %p91, %p92
      %p95 = scmp.ne.s32.totalorder %s78, %s94
      %p96 = scmp.eq.s32.totalorder %s23, 0
      %p97 = por %p95, %p96
      %s98 = ssub.s32 %s17, %s24
      %p99 = scmp.eq.s32.totalorder %s98, 0
      %s101 = sadd.s32 %s100, 1
      %s102 = scalar_select %p99, %s100, %s101
      %p105 = pneg %p99
      %p106 = scmp.eq.s32.totalorder %s17, 1
      %p107 = por %p105, %p106
      %p108 = scmp.ne.s32.totalorder %s100, %s103
      %p109 = scmp.eq.s32.totalorder %s17, 0
      %p110 = por %p108, %p109
      %p111 = scmp.ne.s32.totalorder %s100, %s103
      %p112 = scmp.eq.s32.totalorder %s22, 1
      %p113 = por %p111, %p112
      %p114 = scmp.ne.s32.totalorder %s103, %s104
      %p115 = scmp.eq.s32.totalorder %s22, 0
      %p116 = por %p114, %p115
      %p117 = scmp.ne.s32.totalorder %s103, %s104
      %p118 = scmp.eq.s32.totalorder %s23, 1
      %p119 = por %p117, %p118
      %p121 = scmp.ne.s32.totalorder %s104, %s120
      %p122 = scmp.eq.s32.totalorder %s23, 0
      %p123 = por %p121, %p122
      %s124 = ssub.s32 %s17, %s24
      %p125 = scmp.eq.s32.totalorder %s124, 0
      %s127 = sadd.s32 %s126, 1
      %s128 = scalar_select %p125, %s126, %s127
      %p131 = pneg %p125
      %p132 = scmp.eq.s32.totalorder %s17, 1
      %p133 = por %p131, %p132
      %p134 = scmp.ne.s32.totalorder %s126, %s129
      %p135 = scmp.eq.s32.totalorder %s17, 0
      %p136 = por %p134, %p135
      %p137 = scmp.ne.s32.totalorder %s126, %s129
      %p138 = scmp.eq.s32.totalorder %s22, 1
      %p139 = por %p137, %p138
      %p140 = scmp.ne.s32.totalorder %s129, %s130
      %p141 = scmp.eq.s32.totalorder %s22, 0
      %p142 = por %p140, %p141
      %p143 = scmp.ne.s32.totalorder %s129, %s130
      %p144 = scmp.eq.s32.totalorder %s23, 1
      %p145 = por %p143, %p144
      %p147 = scmp.ne.s32.totalorder %s130, %s146
      %p148 = scmp.eq.s32.totalorder %s23, 0
      %p149 = por %p147, %p148
      %s150 = ssub.s32 %s17, %s24
      %p151 = scmp.eq.s32.totalorder %s150, 0
      %s153 = sadd.s32 %s152, 1
      %s154 = scalar_select %p151, %s152, %s153
      %p157 = pneg %p151
      %p158 = scmp.eq.s32.totalorder %s17, 1
      %p159 = por %p157, %p158
      %p160 = scmp.ne.s32.totalorder %s152, %s155
      %p161 = scmp.eq.s32.totalorder %s17, 0
      %p162 = por %p160, %p161
      %p163 = scmp.ne.s32.totalorder %s152, %s155
      %p164 = scmp.eq.s32.totalorder %s22, 1
      %p165 = por %p163, %p164
      %p166 = scmp.ne.s32.totalorder %s155, %s156
      %p167 = scmp.eq.s32.totalorder %s22, 0
      %p168 = por %p166, %p167
      %p169 = scmp.ne.s32.totalorder %s155, %s156
      %p170 = scmp.eq.s32.totalorder %s23, 1
      %p171 = por %p169, %p170
      %p173 = scmp.ne.s32.totalorder %s156, %s172
      %p174 = scmp.eq.s32.totalorder %s23, 0
      %p175 = por %p173, %p174
      %s176 = ssub.s32 %s17, %s24
      %p177 = scmp.eq.s32.totalorder %s176, 0
      %s179 = sadd.s32 %s178, 1
      %s180 = scalar_select %p177, %s178, %s179
      %p183 = pneg %p177
      %p184 = scmp.eq.s32.totalorder %s17, 1
      %p185 = por %p183, %p184
      %p186 = scmp.ne.s32.totalorder %s178, %s181
      %p187 = scmp.eq.s32.totalorder %s17, 0
      %p188 = por %p186, %p187
      %p189 = scmp.ne.s32.totalorder %s178, %s181
      %p190 = scmp.eq.s32.totalorder %s22, 1
      %p191 = por %p189, %p190
      %p192 = scmp.ne.s32.totalorder %s181, %s182
      %p193 = scmp.eq.s32.totalorder %s22, 0
      %p194 = por %p192, %p193
      %p195 = scmp.ne.s32.totalorder %s181, %s182
      %p196 = scmp.eq.s32.totalorder %s23, 1
      %p197 = por %p195, %p196
      %p199 = scmp.ne.s32.totalorder %s182, %s198
      %p200 = scmp.eq.s32.totalorder %s23, 0
      %p201 = por %p199, %p200
      %s203 = sadd.s32 %s202, 1
      %p206 = scmp.eq.s32.totalorder %s17, 1
      %p207 = scmp.ne.s32.totalorder %s202, %s204
      %p208 = scmp.eq.s32.totalorder %s17, 0
      %p209 = por %p207, %p208
      %p210 = scmp.ne.s32.totalorder %s202, %s204
      %p211 = scmp.eq.s32.totalorder %s22, 1
      %p212 = por %p210, %p211
      %p213 = scmp.ne.s32.totalorder %s204, %s205
      %p214 = scmp.eq.s32.totalorder %s22, 0
      %p215 = por %p213, %p214
      %p216 = scmp.ne.s32.totalorder %s204, %s205
      %p217 = scmp.eq.s32.totalorder %s23, 1
      %p218 = por %p216, %p217
      %p220 = scmp.ne.s32.totalorder %s205, %s219
      %p221 = scmp.eq.s32.totalorder %s23, 0
      %p222 = por %p220, %p221
      %p223 = scmp.le.s32.totalorder 1, %s17
      %p224 = scmp.lt.s32.totalorder %s17, 3
      %p225 = pnand %p223, %p224
      %p226 = pneg %p225
      // Predicated region
      $region9: #{tpu_custom_call.1} parent=5 // pred_check
        _
      $region10: #{tpu_custom_call.1} parent=5 // pred_check_branch
        %228 = sbr.rel (%p225) target = $region12
      $region11: #{tpu_custom_call.1} parent=5 // pred_region
        %s229 = ssub.s32 %s17, 1
        // Predicated region
        $region13: #{tpu_custom_call.1} parent=11 // pred_check
          %p230 = pneg %p38
        $region14: #{tpu_custom_call.1} parent=11 // pred_check_branch
          %232 = sbr.rel (%p230) target = $region16
        $region15: #{tpu_custom_call.1} parent=11 // pred_region
          _
        $region16: #{tpu_custom_call.1} parent=11 // pred_fallthru
          _
      $region12: #{tpu_custom_call.1} parent=5 // pred_fallthru
        _
      %p233 = scmp.lt.s32.totalorder %s17, 2
      // Predicated region
      $region17: #{tpu_custom_call.1} parent=5 // pred_check
        %p234 = pneg %p233
      $region18: #{tpu_custom_call.1} parent=5 // pred_check_branch
        %236 = sbr.rel (%p234) target = $region20
      $region19: #{tpu_custom_call.1} parent=5 // pred_region
        // Predicated region
        $region21: #{tpu_custom_call.1} parent=19 // pred_check
          %p237 = pneg %p58
        $region22: #{tpu_custom_call.1} parent=19 // pred_check_branch
          %239 = sbr.rel (%p237) target = $region24
        $region23: #{tpu_custom_call.1} parent=19 // pred_region
          %p240 = scmp.lt.s32.totalorder %s17, 1
          %s241 = scalar_select %p240, %s17, 1
          %s242 = smul.addr %s241, 4
          %s243 = smul.addr %s242, 4
          %s244 = scalar_lea.vmem %s1, %s243
        $region24: #{tpu_custom_call.1} parent=19 // pred_fallthru
          _
        // Predicated region
        $region25: #{tpu_custom_call.1} parent=19 // pred_check
          %p245 = pneg %p84
        $region26: #{tpu_custom_call.1} parent=19 // pred_check_branch
          %247 = sbr.rel (%p245) target = $region28
        $region27: #{tpu_custom_call.1} parent=19 // pred_region
          %p248 = scmp.lt.s32.totalorder %s17, 1
          %s249 = scalar_select %p248, %s17, 1
          %s250 = smul.addr %s249, 4
          %s251 = smul.addr %s250, 4
          %s252 = scalar_lea.vmem %s2, %s251
        $region28: #{tpu_custom_call.1} parent=19 // pred_fallthru
          _
        // Predicated region
        $region29: #{tpu_custom_call.1} parent=19 // pred_check
          %p253 = pneg %p110
        $region30: #{tpu_custom_call.1} parent=19 // pred_check_branch
          %255 = sbr.rel (%p253) target = $region32
        $region31: #{tpu_custom_call.1} parent=19 // pred_region
          %s256 = sand.u32 %s100, 1
          %s257 = scalar_lea.sflag [#allocation4], %s256
          %s258 = sand.u32 %s100, 1
          %s259 = smul.addr %s258, 16
          %s260 = scalar_lea.vmem [#allocation3], %s259
          %s262 = ssub.s32 256, 256
          %263 = vsyncadd %s257, %s262
          %s264 = smul.addr %s17, 4
          %s265 = smul.addr %s264, 64
          %s266 = scalar_lea.hbm %s3, %s265
          %s267 = sshll.u32 %s260, 4
          %s268 = int_to_ptr.vmem [resolvable:$true] %s267
          %273 = dma.hbm_to_vmem [thread:$0]  %s266, 256, %s268, %s257, 64, 64, 4
        $region32: #{tpu_custom_call.1} parent=19 // pred_fallthru
          _
        // Predicated region
        $region33: #{tpu_custom_call.1} parent=19 // pred_check
          %p274 = pneg %p136
        $region34: #{tpu_custom_call.1} parent=19 // pred_check_branch
          %276 = sbr.rel (%p274) target = $region36
        $region35: #{tpu_custom_call.1} parent=19 // pred_region
          %p277 = scmp.lt.s32.totalorder %s17, 1
          %s278 = scalar_select %p277, %s17, 1
          %s279 = scalar_lea.vmem %s4, %s278
        $region36: #{tpu_custom_call.1} parent=19 // pred_fallthru
          _
        // Predicated region
        $region37: #{tpu_custom_call.1} parent=19 // pred_check
          %p280 = pneg %p162
        $region38: #{tpu_custom_call.1} parent=19 // pred_check_branch
          %282 = sbr.rel (%p280) target = $region40
        $region39: #{tpu_custom_call.1} parent=19 // pred_region
          %p283 = scmp.lt.s32.totalorder %s17, 1
          %s284 = scalar_select %p283, %s17, 1
          %s285 = smul.addr %s284, 8
          %s286 = smul.addr %s285, 4
          %s287 = scalar_lea.vmem %s5, %s286
        $region40: #{tpu_custom_call.1} parent=19 // pred_fallthru
          _
        // Predicated region
        $region41: #{tpu_custom_call.1} parent=19 // pred_check
          %p288 = pneg %p188
        $region42: #{tpu_custom_call.1} parent=19 // pred_check_branch
          %290 = sbr.rel (%p288) target = $region44
        $region43: #{tpu_custom_call.1} parent=19 // pred_region
          %p291 = scmp.lt.s32.totalorder %s17, 1
          %s292 = scalar_select %p291, %s17, 1
          %s293 = smul.addr %s292, 8
          %s294 = scalar_lea.vmem %s6, %s293
        $region44: #{tpu_custom_call.1} parent=19 // pred_fallthru
          _
      $region20: #{tpu_custom_call.1} parent=5 // pred_fallthru
        _
      %p295 = scmp.le.s32.totalorder 1, %s17
      %p296 = scmp.lt.s32.totalorder %s17, 3
      %p297 = pnand %p295, %p296
      %p298 = pneg %p297
      // Predicated region
      $region45: #{tpu_custom_call.1} parent=5 // pred_check
        _
      $region46: #{tpu_custom_call.1} parent=5 // pred_check_branch
        %300 = sbr.rel (%p297) target = $region48
      $region47: #{tpu_custom_call.1} parent=5 // pred_region
        %s301 = ssub.s32 %s17, 1
        %s302 = sand.u32 %s103, 1
        %s303 = scalar_lea.sflag [#allocation4], %s302
        %s304 = sand.u32 %s103, 1
        %s305 = smul.addr %s304, 16
        %s306 = scalar_lea.vmem [#allocation3], %s305
        // Predicated region
        $region49: #{tpu_custom_call.1} parent=47 // pred_check
          %p307 = pneg %p116
        $region50: #{tpu_custom_call.1} parent=47 // pred_check_branch
          %309 = sbr.rel (%p307) target = $region52
        $region51: #{tpu_custom_call.1} parent=47 // pred_region
          %310 = dma.done %s303, 256
        $region52: #{tpu_custom_call.1} parent=47 // pred_fallthru
          _
        %p311 = pneg %p38
        %p312 = pneg %p35
        %p313 = scmp.lt.s32.totalorder %s22, 1
        %s314 = scalar_select %p313, %s22, 1
        %s315 = smul.addr %s314, 4
        %s316 = smul.addr %s315, 4
        %s317 = scalar_lea.vmem %s1, %s316
        %p318 = pneg %p64
        %p319 = pneg %p61
        %p320 = scmp.lt.s32.totalorder %s22, 1
        %s321 = scalar_select %p320, %s22, 1
        %s322 = smul.addr %s321, 4
        %s323 = smul.addr %s322, 4
        %s324 = scalar_lea.vmem %s2, %s323
        %p325 = pneg %p90
        %p326 = pneg %p87
        %s327 = sand.u32 %s103, 1
        %s328 = scalar_lea.sflag [#allocation4], %s327
        %s329 = sand.u32 %s103, 1
        %s330 = smul.addr %s329, 16
        %s331 = scalar_lea.vmem [#allocation3], %s330
        %p332 = pneg %p116
        %p333 = pneg %p113
        %p334 = scmp.lt.s32.totalorder %s22, 1
        %s335 = scalar_select %p334, %s22, 1
        %s336 = scalar_lea.vmem %s4, %s335
        %p337 = pneg %p142
        %p338 = pneg %p139
        %p339 = scmp.lt.s32.totalorder %s22, 1
        %s340 = scalar_select %p339, %s22, 1
        %s341 = smul.addr %s340, 8
        %s342 = smul.addr %s341, 4
        %s343 = scalar_lea.vmem %s5, %s342
        %p344 = pneg %p168
        %p345 = pneg %p165
        %p346 = scmp.lt.s32.totalorder %s22, 1
        %s347 = scalar_select %p346, %s22, 1
        %s348 = smul.addr %s347, 8
        %s349 = scalar_lea.vmem %s6, %s348
        %p350 = pneg %p194
        %p351 = pneg %p191
        %p352 = pneg %p215
        %p353 = pneg %p212
        %p354 = scmp.lt.s32.totalorder %s22, 1
        %s355 = scalar_select %p354, %s22, 1
        %s356 = smul.addr %s355, 4
        %s357 = smul.addr %s356, 4
        %s358 = scalar_lea.vmem %s1, %s357
        %p359 = scmp.lt.s32.totalorder %s22, 1
        %s360 = scalar_select %p359, %s22, 1
        %s361 = smul.addr %s360, 4
        %s362 = smul.addr %s361, 4
        %s363 = scalar_lea.vmem %s2, %s362
        %p364 = scmp.lt.s32.totalorder %s22, 1
        %s365 = scalar_select %p364, %s22, 1
        %s366 = scalar_lea.vmem %s4, %s365
        %p367 = scmp.lt.s32.totalorder %s22, 1
        %s368 = scalar_select %p367, %s22, 1
        %s369 = smul.addr %s368, 8
        %s370 = smul.addr %s369, 4
        %s371 = scalar_lea.vmem %s5, %s370
        %p372 = scmp.lt.s32.totalorder %s22, 1
        %s373 = scalar_select %p372, %s22, 1
        %s374 = smul.addr %s373, 8
        %s375 = scalar_lea.vmem %s6, %s374
        %p377 = scmp.eq.s32.totalorder %s22, 0
        // Predicated region
        $region53: #{tpu_custom_call.1} parent=47 // pred_check
          %p378 = pneg %p377
        $region54: #{tpu_custom_call.1} parent=47 // pred_check_branch
          %380 = sbr.rel (%p378) target = $region56
        $region55: #{tpu_custom_call.1} parent=47 // pred_region
          %v381 = vld [vmem:[%s0] sm:$0xff]
          %v382 = vld [vmem:[%s0 + $0x8] sm:$0xff]
          %v383 = vld [vmem:[%s0 + $0x10] sm:$0xff]
          %v384 = vld [vmem:[%s0 + $0x18] sm:$0xff]
          %vm385 = vcmask 261120
          %386 = vst.msk [vmem:[#allocation2] sm:$0xff] %vm385, %v381
          %387 = vst.msk [vmem:[#allocation2 + $0x8] sm:$0xff] %vm385, %v382
          %388 = vst.msk [vmem:[#allocation2 + $0x10] sm:$0xff] %vm385, %v383
          %389 = vst.msk [vmem:[#allocation2 + $0x18] sm:$0xff] %vm385, %v384
        $region56: #{tpu_custom_call.1} parent=47 // pred_fallthru
          _
        %v390 = vld [vmem:[#allocation2] sm:$0xff]
        %v391 = vld [vmem:[#allocation2 + $0x8] sm:$0xff]
        %v392 = vld [vmem:[#allocation2 + $0x10] sm:$0xff]
        %v393 = vld [vmem:[#allocation2 + $0x18] sm:$0xff]
        %v394 = vld [vmem:[%s358] sm:$0xf]
        %v395 = vld [vmem:[%s358 + $0x4] sm:$0xf]
        %v396 = vld [vmem:[%s358 + $0x8] sm:$0xf]
        %v397 = vld [vmem:[%s358 + $0xc] sm:$0xf]
        %v398 = vld [vmem:[%s363] sm:$0xf]
        %v399 = vld [vmem:[%s363 + $0x4] sm:$0xf]
        %v400 = vld [vmem:[%s363 + $0x8] sm:$0xf]
        %v401 = vld [vmem:[%s363 + $0xc] sm:$0xf]
        %v402 = vld [vmem:[%s306] sm:$0xf]
        %v403 = vld [vmem:[%s306 + $0x4] sm:$0xf]
        %v404 = vld [vmem:[%s306 + $0x8] sm:$0xf]
        %v405 = vld [vmem:[%s306 + $0xc] sm:$0xf]
        %v406 = vld [vmem:[%s366] sm:$0x1]
        %v407 = vld [vmem:[%s371] sm:$0xf]
        %v408 = vld [vmem:[%s371 + $0x4] sm:$0xf]
        %v409 = vld [vmem:[%s371 + $0x8] sm:$0xf]
        %v410 = vld [vmem:[%s371 + $0xc] sm:$0xf]
        %v411 = vld [vmem:[%s371 + $0x10] sm:$0xf]
        %v412 = vld [vmem:[%s371 + $0x14] sm:$0xf]
        %v413 = vld [vmem:[%s371 + $0x18] sm:$0xf]
        %v414 = vld [vmem:[%s371 + $0x1c] sm:$0xf]
        %v415 = vld [vmem:[%s375] sm:$0x3f]
        %v416 = vpack.c.bf16 %v391, %v390
        %v417 = vpack.c.bf16 %v393, %v392
        %v422 = vunpack.c.l.b16 %v394
        %v423 = vunpack.c.l.b16 %v395
        %v424 = vunpack.c.l.b16 %v396
        %v425 = vunpack.c.l.b16 %v397
        %v426 = vpack.c.b16 %v423, %v422
        %v427 = vpack.c.b16 %v425, %v424
        %vm430 = vcmask 261120
        %v432 = vsel %vm430, %v416, 0
        %v435 = vsel %vm430, %v417, 0
        %437 = vmatprep.subr.bf16.mxu0 0
        %438 = vmatpush1.bf16.msra.mxu0 %v426
        %439 = vmatprep.subr.bf16.mxu0 0
        %440 = vmatpush1.bf16.msra.mxu0 %v427
        %441 = vmatprep.subr.bf16.mxu0 0
        %442 = vmatpush1.bf16.msra.mxu0 0
        %443 = vmatprep.subr.bf16.mxu0 0
        %444 = vmatpush1.bf16.msra.mxu0 0
        %445 = vmatprep.subr.bf16.mxu0 0
        %446 = vmatpush1.bf16.msra.mxu0 0
        %447 = vmatprep.subr.bf16.mxu0 0
        %448 = vmatpush1.bf16.msra.mxu0 0
        %449 = vmatprep.subr.bf16.mxu0 0
        %450 = vmatpush1.bf16.msra.mxu0 0
        %451 = vmatprep.subr.bf16.mxu0 0
        %452 = vmatpush1.bf16.msra.mxu0 0
        %453 = vmatprep.subr.bf16.mxu0 0
        %454 = vmatpush1.bf16.msra.mxu0 0
        %455 = vmatprep.subr.bf16.mxu0 0
        %456 = vmatpush1.bf16.msra.mxu0 0
        %457 = vmatprep.subr.bf16.mxu0 0
        %458 = vmatpush1.bf16.msra.mxu0 0
        %459 = vmatprep.subr.bf16.mxu0 0
        %460 = vmatpush1.bf16.msra.mxu0 0
        %461 = vmatprep.subr.bf16.mxu0 0
        %462 = vmatpush1.bf16.msra.mxu0 0
        %463 = vmatprep.subr.bf16.mxu0 0
        %464 = vmatpush1.bf16.msra.mxu0 0
        %465 = vmatprep.subr.bf16.mxu0 0
        %466 = vmatpush1.bf16.msra.mxu0 0
        %467 = vmatprep.subr.bf16.mxu0 0
        %468 = vmatpush1.bf16.msra.mxu0 0
        %469 = vmatprep.mubr.bf16.mxu0 0
        %470 = vmatmul.mubr.bf16.gmra.mrb[0].mxu0 %v432
        %v471 = vpop.f32.mrb[0].mxu0
        %v472 = vadd.f32 0.0, %v471
        %v473 = vpop.f32.mrb[0].mxu0
        %v474 = vpop.f32.mrb[0].mxu0
        %v475 = vadd.f32 0.0, %v474
        %v476 = vpop.f32.mrb[0].mxu0
        %477 = vmatprep.mubr.bf16.mxu0 0
        %478 = vmatmul.mubr.bf16.gmra.mrb[0].mxu0 %v435
        %v479 = vpop.f32.mrb[0].mxu0
        %v480 = vadd.f32 0.0, %v479
        %v481 = vpop.f32.mrb[0].mxu0
        %v482 = vpop.f32.mrb[0].mxu0
        %v483 = vadd.f32 0.0, %v482
        %v484 = vpop.f32.mrb[0].mxu0
        %485 = vdwg.mxu0
        %v486 = vpack.c.bf16 %v475, %v472
        %v487 = vpack.c.bf16 %v483, %v480
        %489 = vrot.lane.b32.xlu0 %v486, 96
        %v490 = vpop.permute.xlu0 %489
        %vm491 = vcmask 64512
        %v493 = vsel %vm491, %v486, 0
        %v496 = vsel %vm491, %v490, 0
        %498 = vmatprep.subr.bf16.mxu0 0
        %499 = vmatpush1.bf16.xpose.msra.mxu0 %v496
        %500 = vmatprep.subr.bf16.mxu0 0
        %501 = vmatpush1.bf16.xpose.msra.mxu0 0
        %502 = vmatprep.subr.bf16.mxu0 0
        %503 = vmatpush1.bf16.xpose.msra.mxu0 0
        %504 = vmatprep.subr.bf16.mxu0 0
        %505 = vmatpush1.bf16.xpose.msra.mxu0 0
        %506 = vmatprep.subr.bf16.mxu0 0
        %507 = vmatpush1.bf16.xpose.msra.mxu0 0
        %508 = vmatprep.subr.bf16.mxu0 0
        %509 = vmatpush1.bf16.xpose.msra.mxu0 0
        %510 = vmatprep.subr.bf16.mxu0 0
        %511 = vmatpush1.bf16.xpose.msra.mxu0 0
        %512 = vmatprep.subr.bf16.mxu0 0
        %513 = vmatpush1.bf16.xpose.msra.mxu0 0
        %514 = vmatprep.subr.bf16.mxu0 0
        %515 = vmatpush1.bf16.xpose.msra.mxu0 0
        %516 = vmatprep.subr.bf16.mxu0 0
        %517 = vmatpush1.bf16.xpose.msra.mxu0 0
        %518 = vmatprep.subr.bf16.mxu0 0
        %519 = vmatpush1.bf16.xpose.msra.mxu0 0
        %520 = vmatprep.subr.bf16.mxu0 0
        %521 = vmatpush1.bf16.xpose.msra.mxu0 0
        %522 = vmatprep.subr.bf16.mxu0 0
        %523 = vmatpush1.bf16.xpose.msra.mxu0 0
        %524 = vmatprep.subr.bf16.mxu0 0
        %525 = vmatpush1.bf16.xpose.msra.mxu0 0
        %526 = vmatprep.subr.bf16.mxu0 0
        %527 = vmatpush1.bf16.xpose.msra.mxu0 0
        %528 = vmatprep.subr.bf16.mxu0 0
        %529 = vmatpush1.bf16.xpose.msra.mxu0 0
        %530 = vmatprep.mubr.bf16.mxu0 0
        %531 = vmatmul.mubr.bf16.gmra.mrb[0].mxu0 %v493
        %v532 = vpop.f32.mrb[0].mxu0
        %v533 = vadd.f32 0.0, %v532
        %v534 = vpop.f32.mrb[0].mxu0
        %v535 = vpop.f32.mrb[0].mxu0
        %v536 = vadd.f32 0.0, %v535
        %v537 = vpop.f32.mrb[0].mxu0
        %538 = vdwg.mxu0
        %540 = vrot.lane.b32.xlu0 %v487, 96
        %v541 = vpop.permute.xlu0 %540
        %v543 = vsel %vm491, %v487, 0
        %v546 = vsel %vm491, %v541, 0
        %548 = vmatprep.subr.bf16.mxu0 0
        %549 = vmatpush1.bf16.xpose.msra.mxu0 %v546
        %550 = vmatprep.subr.bf16.mxu0 0
        %551 = vmatpush1.bf16.xpose.msra.mxu0 0
        %552 = vmatprep.subr.bf16.mxu0 0
        %553 = vmatpush1.bf16.xpose.msra.mxu0 0
        %554 = vmatprep.subr.bf16.mxu0 0
        %555 = vmatpush1.bf16.xpose.msra.mxu0 0
        %556 = vmatprep.subr.bf16.mxu0 0
        %557 = vmatpush1.bf16.xpose.msra.mxu0 0
        %558 = vmatprep.subr.bf16.mxu0 0
        %559 = vmatpush1.bf16.xpose.msra.mxu0 0
        %560 = vmatprep.subr.bf16.mxu0 0
        %561 = vmatpush1.bf16.xpose.msra.mxu0 0
        %562 = vmatprep.subr.bf16.mxu0 0
        %563 = vmatpush1.bf16.xpose.msra.mxu0 0
        %564 = vmatprep.subr.bf16.mxu0 0
        %565 = vmatpush1.bf16.xpose.msra.mxu0 0
        %566 = vmatprep.subr.bf16.mxu0 0
        %567 = vmatpush1.bf16.xpose.msra.mxu0 0
        %568 = vmatprep.subr.bf16.mxu0 0
        %569 = vmatpush1.bf16.xpose.msra.mxu0 0
        %570 = vmatprep.subr.bf16.mxu0 0
        %571 = vmatpush1.bf16.xpose.msra.mxu0 0
        %572 = vmatprep.subr.bf16.mxu0 0
        %573 = vmatpush1.bf16.xpose.msra.mxu0 0
        %574 = vmatprep.subr.bf16.mxu0 0
        %575 = vmatpush1.bf16.xpose.msra.mxu0 0
        %576 = vmatprep.subr.bf16.mxu0 0
        %577 = vmatpush1.bf16.xpose.msra.mxu0 0
        %578 = vmatprep.subr.bf16.mxu0 0
        %579 = vmatpush1.bf16.xpose.msra.mxu0 0
        %580 = vmatprep.mubr.bf16.mxu0 0
        %581 = vmatmul.mubr.bf16.gmra.mrb[0].mxu0 %v543
        %v582 = vpop.f32.mrb[0].mxu0
        %v583 = vadd.f32 0.0, %v582
        %v584 = vpop.f32.mrb[0].mxu0
        %v585 = vpop.f32.mrb[0].mxu0
        %v586 = vadd.f32 0.0, %v585
        %v587 = vpop.f32.mrb[0].mxu0
        %588 = vdwg.mxu0
        %v589 = vmul.f32 %v533, 0.35355338
        %v590 = vmul.f32 %v536, 0.35355338
        %v591 = vmul.f32 %v583, 0.35355338
        %v592 = vmul.f32 %v586, 0.35355338
        %vm593 = vcmask 130048
        %v594 = vsel %vm593, %v589, -inf
        %595 = vmax.xlane.f32.xlu0 %v594
        %v596 = vpop.xlane.xlu0 %595
        %v597 = vsel %vm593, %v590, -inf
        %598 = vmax.xlane.f32.xlu0 %v597
        %v599 = vpop.xlane.xlu0 %598
        %v600 = vsel %vm593, %v591, -inf
        %601 = vmax.xlane.f32.xlu0 %v600
        %v602 = vpop.xlane.xlu0 %601
        %v603 = vsel %vm593, %v592, -inf
        %604 = vmax.xlane.f32.xlu0 %v603
        %v605 = vpop.xlane.xlu0 %604
        %v606 = vsub.f32 %v589, %v596
        %v607 = vsub.f32 %v590, %v599
        %v608 = vsub.f32 %v591, %v602
        %v609 = vsub.f32 %v592, %v605
        %v610 = vmul.f32 %v606, 1.442695
        %v611 = vpow.pop %v610
        %v612 = vmul.f32 %v607, 1.442695
        %v613 = vpow.pop %v612
        %v614 = vmul.f32 %v608, 1.442695
        %v615 = vpow.pop %v614
        %v616 = vmul.f32 %v609, 1.442695
        %v617 = vpow.pop %v616
        %v618 = vsel %vm593, %v611, 0.0
        %619 = vadd.xlane.f32.xlu0 %v618
        %v620 = vpop.xlane.xlu0 %619
        %v621 = vsel %vm593, %v613, 0.0
        %622 = vadd.xlane.f32.xlu0 %v621
        %v623 = vpop.xlane.xlu0 %622
        %v624 = vsel %vm593, %v615, 0.0
        %625 = vadd.xlane.f32.xlu0 %v624
        %v626 = vpop.xlane.xlu0 %625
        %v627 = vsel %vm593, %v617, 0.0
        %628 = vadd.xlane.f32.xlu0 %v627
        %v629 = vpop.xlane.xlu0 %628
        %v630 = vrcp.pop %v620
        %v631 = vrcp.pop %v623
        %v632 = vrcp.pop %v626
        %v633 = vrcp.pop %v629
        %v634 = vmul.f32 %v611, %v630
        %v635 = vmul.f32 %v613, %v631
        %v636 = vmul.f32 %v615, %v632
        %v637 = vmul.f32 %v617, %v633
        %v638 = vpack.c.bf16 %v635, %v634
        %v639 = vpack.c.bf16 %v637, %v636
        %640 = vrot.lane.b32.xlu0 %v486, 64
        %v641 = vpop.permute.xlu0 %640
        %v644 = vsel %vm593, %v638, 0
        %646 = vmatprep.subr.bf16.mxu0 0
        %647 = vmatpush1.bf16.msra.mxu0 %v641
        %648 = vmatprep.subr.bf16.mxu0 0
        %649 = vmatpush1.bf16.msra.mxu0 0
        %650 = vmatprep.subr.bf16.mxu0 0
        %651 = vmatpush1.bf16.msra.mxu0 0
        %652 = vmatprep.subr.bf16.mxu0 0
        %653 = vmatpush1.bf16.msra.mxu0 0
        %654 = vmatprep.subr.bf16.mxu0 0
        %655 = vmatpush1.bf16.msra.mxu0 0
        %656 = vmatprep.subr.bf16.mxu0 0
        %657 = vmatpush1.bf16.msra.mxu0 0
        %658 = vmatprep.subr.bf16.mxu0 0
        %659 = vmatpush1.bf16.msra.mxu0 0
        %660 = vmatprep.subr.bf16.mxu0 0
        %661 = vmatpush1.bf16.msra.mxu0 0
        %662 = vmatprep.subr.bf16.mxu0 0
        %663 = vmatpush1.bf16.msra.mxu0 0
        %664 = vmatprep.subr.bf16.mxu0 0
        %665 = vmatpush1.bf16.msra.mxu0 0
        %666 = vmatprep.subr.bf16.mxu0 0
        %667 = vmatpush1.bf16.msra.mxu0 0
        %668 = vmatprep.subr.bf16.mxu0 0
        %669 = vmatpush1.bf16.msra.mxu0 0
        %670 = vmatprep.subr.bf16.mxu0 0
        %671 = vmatpush1.bf16.msra.mxu0 0
        %672 = vmatprep.subr.bf16.mxu0 0
        %673 = vmatpush1.bf16.msra.mxu0 0
        %674 = vmatprep.subr.bf16.mxu0 0
        %675 = vmatpush1.bf16.msra.mxu0 0
        %676 = vmatprep.subr.bf16.mxu0 0
        %677 = vmatpush1.bf16.msra.mxu0 0
        %678 = vmatprep.mubr.bf16.mxu0 0
        %679 = vmatmul.mubr.bf16.gmra.mrb[0].mxu0 %v644
        %v680 = vpop.f32.mrb[0].mxu0
        %v681 = vadd.f32 0.0, %v680
        %v682 = vpop.f32.mrb[0].mxu0
        %v683 = vpop.f32.mrb[0].mxu0
        %v684 = vadd.f32 0.0, %v683
        %v685 = vpop.f32.mrb[0].mxu0
        %686 = vdwg.mxu0
        %687 = vrot.lane.b32.xlu0 %v487, 64
        %v688 = vpop.permute.xlu0 %687
        %v691 = vsel %vm593, %v639, 0
        %693 = vmatprep.subr.bf16.mxu0 0
        %694 = vmatpush1.bf16.msra.mxu0 %v688
        %695 = vmatprep.subr.bf16.mxu0 0
        %696 = vmatpush1.bf16.msra.mxu0 0
        %697 = vmatprep.subr.bf16.mxu0 0
        %698 = vmatpush1.bf16.msra.mxu0 0
        %699 = vmatprep.subr.bf16.mxu0 0
        %700 = vmatpush1.bf16.msra.mxu0 0
        %701 = vmatprep.subr.bf16.mxu0 0
        %702 = vmatpush1.bf16.msra.mxu0 0
        %703 = vmatprep.subr.bf16.mxu0 0
        %704 = vmatpush1.bf16.msra.mxu0 0
        %705 = vmatprep.subr.bf16.mxu0 0
        %706 = vmatpush1.bf16.msra.mxu0 0
        %707 = vmatprep.subr.bf16.mxu0 0
        %708 = vmatpush1.bf16.msra.mxu0 0
        %709 = vmatprep.subr.bf16.mxu0 0
        %710 = vmatpush1.bf16.msra.mxu0 0
        %711 = vmatprep.subr.bf16.mxu0 0
        %712 = vmatpush1.bf16.msra.mxu0 0
        %713 = vmatprep.subr.bf16.mxu0 0
        %714 = vmatpush1.bf16.msra.mxu0 0
        %715 = vmatprep.subr.bf16.mxu0 0
        %716 = vmatpush1.bf16.msra.mxu0 0
        %717 = vmatprep.subr.bf16.mxu0 0
        %718 = vmatpush1.bf16.msra.mxu0 0
        %719 = vmatprep.subr.bf16.mxu0 0
        %720 = vmatpush1.bf16.msra.mxu0 0
        %721 = vmatprep.subr.bf16.mxu0 0
        %722 = vmatpush1.bf16.msra.mxu0 0
        %723 = vmatprep.subr.bf16.mxu0 0
        %724 = vmatpush1.bf16.msra.mxu0 0
        %725 = vmatprep.mubr.bf16.mxu0 0
        %726 = vmatmul.mubr.bf16.gmra.mrb[0].mxu0 %v691
        %v727 = vpop.f32.mrb[0].mxu0
        %v728 = vadd.f32 0.0, %v727
        %v729 = vpop.f32.mrb[0].mxu0
        %v730 = vpop.f32.mrb[0].mxu0
        %v731 = vadd.f32 0.0, %v730
        %v732 = vpop.f32.mrb[0].mxu0
        %733 = vdwg.mxu0
        %734 = vrot.lane.b32.xlu0 %v486, 120
        %v735 = vpop.permute.xlu0 %734
        %736 = vrot.lane.b32.xlu0 %v486, 88
        %v737 = vpop.permute.xlu0 %736
        %v739 = vsel %vm491, %v735, 0
        %v742 = vsel %vm491, %v737, 0
        %744 = vmatprep.subr.bf16.mxu0 0
        %745 = vmatpush1.bf16.xpose.msra.mxu0 %v742
        %746 = vmatprep.subr.bf16.mxu0 0
        %747 = vmatpush1.bf16.xpose.msra.mxu0 0
        %748 = vmatprep.subr.bf16.mxu0 0
        %749 = vmatpush1.bf16.xpose.msra.mxu0 0
        %750 = vmatprep.subr.bf16.mxu0 0
        %751 = vmatpush1.bf16.xpose.msra.mxu0 0
        %752 = vmatprep.subr.bf16.mxu0 0
        %753 = vmatpush1.bf16.xpose.msra.mxu0 0
        %754 = vmatprep.subr.bf16.mxu0 0
        %755 = vmatpush1.bf16.xpose.msra.mxu0 0
        %756 = vmatprep.subr.bf16.mxu0 0
        %757 = vmatpush1.bf16.xpose.msra.mxu0 0
        %758 = vmatprep.subr.bf16.mxu0 0
        %759 = vmatpush1.bf16.xpose.msra.mxu0 0
        %760 = vmatprep.subr.bf16.mxu0 0
        %761 = vmatpush1.bf16.xpose.msra.mxu0 0
        %762 = vmatprep.subr.bf16.mxu0 0
        %763 = vmatpush1.bf16.xpose.msra.mxu0 0
        %764 = vmatprep.subr.bf16.mxu0 0
        %765 = vmatpush1.bf16.xpose.msra.mxu0 0
        %766 = vmatprep.subr.bf16.mxu0 0
        %767 = vmatpush1.bf16.xpose.msra.mxu0 0
        %768 = vmatprep.subr.bf16.mxu0 0
        %769 = vmatpush1.bf16.xpose.msra.mxu0 0
        %770 = vmatprep.subr.bf16.mxu0 0
        %771 = vmatpush1.bf16.xpose.msra.mxu0 0
        %772 = vmatprep.subr.bf16.mxu0 0
        %773 = vmatpush1.bf16.xpose.msra.mxu0 0
        %774 = vmatprep.subr.bf16.mxu0 0
        %775 = vmatpush1.bf16.xpose.msra.mxu0 0
        %776 = vmatprep.mubr.bf16.mxu0 0
        %777 = vmatmul.mubr.bf16.gmra.mrb[0].mxu0 %v739
        %v778 = vpop.f32.mrb[0].mxu0
        %v779 = vadd.f32 0.0, %v778
        %v780 = vpop.f32.mrb[0].mxu0
        %v781 = vpop.f32.mrb[0].mxu0
        %v782 = vadd.f32 0.0, %v781
        %v783 = vpop.f32.mrb[0].mxu0
        %784 = vdwg.mxu0
        %785 = vrot.lane.b32.xlu0 %v487, 120
        %v786 = vpop.permute.xlu0 %785
        %787 = vrot.lane.b32.xlu0 %v487, 88
        %v788 = vpop.permute.xlu0 %787
        %v790 = vsel %vm491, %v786, 0
        %v793 = vsel %vm491, %v788, 0
        %795 = vmatprep.subr.bf16.mxu0 0
        %796 = vmatpush1.bf16.xpose.msra.mxu0 %v793
        %797 = vmatprep.subr.bf16.mxu0 0
        %798 = vmatpush1.bf16.xpose.msra.mxu0 0
        %799 = vmatprep.subr.bf16.mxu0 0
        %800 = vmatpush1.bf16.xpose.msra.mxu0 0
        %801 = vmatprep.subr.bf16.mxu0 0
        %802 = vmatpush1.bf16.xpose.msra.mxu0 0
        %803 = vmatprep.subr.bf16.mxu0 0
        %804 = vmatpush1.bf16.xpose.msra.mxu0 0
        %805 = vmatprep.subr.bf16.mxu0 0
        %806 = vmatpush1.bf16.xpose.msra.mxu0 0
        %807 = vmatprep.subr.bf16.mxu0 0
        %808 = vmatpush1.bf16.xpose.msra.mxu0 0
        %809 = vmatprep.subr.bf16.mxu0 0
        %810 = vmatpush1.bf16.xpose.msra.mxu0 0
        %811 = vmatprep.subr.bf16.mxu0 0
        %812 = vmatpush1.bf16.xpose.msra.mxu0 0
        %813 = vmatprep.subr.bf16.mxu0 0
        %814 = vmatpush1.bf16.xpose.msra.mxu0 0
        %815 = vmatprep.subr.bf16.mxu0 0
        %816 = vmatpush1.bf16.xpose.msra.mxu0 0
        %817 = vmatprep.subr.bf16.mxu0 0
        %818 = vmatpush1.bf16.xpose.msra.mxu0 0
        %819 = vmatprep.subr.bf16.mxu0 0
        %820 = vmatpush1.bf16.xpose.msra.mxu0 0
        %821 = vmatprep.subr.bf16.mxu0 0
        %822 = vmatpush1.bf16.xpose.msra.mxu0 0
        %823 = vmatprep.subr.bf16.mxu0 0
        %824 = vmatpush1.bf16.xpose.msra.mxu0 0
        %825 = vmatprep.subr.bf16.mxu0 0
        %826 = vmatpush1.bf16.xpose.msra.mxu0 0
        %827 = vmatprep.mubr.bf16.mxu0 0
        %828 = vmatmul.mubr.bf16.gmra.mrb[0].mxu0 %v790
        %v829 = vpop.f32.mrb[0].mxu0
        %v830 = vadd.f32 0.0, %v829
        %v831 = vpop.f32.mrb[0].mxu0
        %v832 = vpop.f32.mrb[0].mxu0
        %v833 = vadd.f32 0.0, %v832
        %v834 = vpop.f32.mrb[0].mxu0
        %835 = vdwg.mxu0
        %v836 = vmul.f32 %v779, 0.35355338
        %v837 = vmul.f32 %v782, 0.35355338
        %v838 = vmul.f32 %v830, 0.35355338
        %v839 = vmul.f32 %v833, 0.35355338
        %v840 = vsel %vm593, %v836, -inf
        %841 = vmax.xlane.f32.xlu0 %v840
        %v842 = vpop.xlane.xlu0 %841
        %v843 = vsel %vm593, %v837, -inf
        %844 = vmax.xlane.f32.xlu0 %v843
        %v845 = vpop.xlane.xlu0 %844
        %v846 = vsel %vm593, %v838, -inf
        %847 = vmax.xlane.f32.xlu0 %v846
        %v848 = vpop.xlane.xlu0 %847
        %v849 = vsel %vm593, %v839, -inf
        %850 = vmax.xlane.f32.xlu0 %v849
        %v851 = vpop.xlane.xlu0 %850
        %v852 = vsub.f32 %v836, %v842
        %v853 = vsub.f32 %v837, %v845
        %v854 = vsub.f32 %v838, %v848
        %v855 = vsub.f32 %v839, %v851
        %v856 = vmul.f32 %v852, 1.442695
        %v857 = vpow.pop %v856
        %v858 = vmul.f32 %v853, 1.442695
        %v859 = vpow.pop %v858
        %v860 = vmul.f32 %v854, 1.442695
        %v861 = vpow.pop %v860
        %v862 = vmul.f32 %v855, 1.442695
        %v863 = vpow.pop %v862
        %v864 = vsel %vm593, %v857, 0.0
        %865 = vadd.xlane.f32.xlu0 %v864
        %v866 = vpop.xlane.xlu0 %865
        %v867 = vsel %vm593, %v859, 0.0
        %868 = vadd.xlane.f32.xlu0 %v867
        %v869 = vpop.xlane.xlu0 %868
        %v870 = vsel %vm593, %v861, 0.0
        %871 = vadd.xlane.f32.xlu0 %v870
        %v872 = vpop.xlane.xlu0 %871
        %v873 = vsel %vm593, %v863, 0.0
        %874 = vadd.xlane.f32.xlu0 %v873
        %v875 = vpop.xlane.xlu0 %874
        %v876 = vrcp.pop %v866
        %v877 = vrcp.pop %v869
        %v878 = vrcp.pop %v872
        %v879 = vrcp.pop %v875
        %v880 = vmul.f32 %v857, %v876
        %v881 = vmul.f32 %v859, %v877
        %v882 = vmul.f32 %v861, %v878
        %v883 = vmul.f32 %v863, %v879
        %v884 = vpack.c.bf16 %v881, %v880
        %v885 = vpack.c.bf16 %v883, %v882
        %886 = vrot.lane.b32.xlu0 %v486, 56
        %v887 = vpop.permute.xlu0 %886
        %v890 = vsel %vm593, %v884, 0
        %892 = vmatprep.subr.bf16.mxu0 0
        %893 = vmatpush1.bf16.msra.mxu0 %v887
        %894 = vmatprep.subr.bf16.mxu0 0
        %895 = vmatpush1.bf16.msra.mxu0 0
        %896 = vmatprep.subr.bf16.mxu0 0
        %897 = vmatpush1.bf16.msra.mxu0 0
        %898 = vmatprep.subr.bf16.mxu0 0
        %899 = vmatpush1.bf16.msra.mxu0 0
        %900 = vmatprep.subr.bf16.mxu0 0
        %901 = vmatpush1.bf16.msra.mxu0 0
        %902 = vmatprep.subr.bf16.mxu0 0
        %903 = vmatpush1.bf16.msra.mxu0 0
        %904 = vmatprep.subr.bf16.mxu0 0
        %905 = vmatpush1.bf16.msra.mxu0 0
        %906 = vmatprep.subr.bf16.mxu0 0
        %907 = vmatpush1.bf16.msra.mxu0 0
        %908 = vmatprep.subr.bf16.mxu0 0
        %909 = vmatpush1.bf16.msra.mxu0 0
        %910 = vmatprep.subr.bf16.mxu0 0
        %911 = vmatpush1.bf16.msra.mxu0 0
        %912 = vmatprep.subr.bf16.mxu0 0
        %913 = vmatpush1.bf16.msra.mxu0 0
        %914 = vmatprep.subr.bf16.mxu0 0
        %915 = vmatpush1.bf16.msra.mxu0 0
        %916 = vmatprep.subr.bf16.mxu0 0
        %917 = vmatpush1.bf16.msra.mxu0 0
        %918 = vmatprep.subr.bf16.mxu0 0
        %919 = vmatpush1.bf16.msra.mxu0 0
        %920 = vmatprep.subr.bf16.mxu0 0
        %921 = vmatpush1.bf16.msra.mxu0 0
        %922 = vmatprep.subr.bf16.mxu0 0
        %923 = vmatpush1.bf16.msra.mxu0 0
        %924 = vmatprep.mubr.bf16.mxu0 0
        %925 = vmatmul.mubr.bf16.gmra.mrb[0].mxu0 %v890
        %v926 = vpop.f32.mrb[0].mxu0
        %v927 = vadd.f32 0.0, %v926
        %v928 = vpop.f32.mrb[0].mxu0
        %v929 = vpop.f32.mrb[0].mxu0
        %v930 = vadd.f32 0.0, %v929
        %v931 = vpop.f32.mrb[0].mxu0
        %932 = vdwg.mxu0
        %933 = vrot.lane.b32.xlu0 %v487, 56
        %v934 = vpop.permute.xlu0 %933
        %v937 = vsel %vm593, %v885, 0
        %939 = vmatprep.subr.bf16.mxu0 0
        %940 = vmatpush1.bf16.msra.mxu0 %v934
        %941 = vmatprep.subr.bf16.mxu0 0
        %942 = vmatpush1.bf16.msra.mxu0 0
        %943 = vmatprep.subr.bf16.mxu0 0
        %944 = vmatpush1.bf16.msra.mxu0 0
        %945 = vmatprep.subr.bf16.mxu0 0
        %946 = vmatpush1.bf16.msra.mxu0 0
        %947 = vmatprep.subr.bf16.mxu0 0
        %948 = vmatpush1.bf16.msra.mxu0 0
        %949 = vmatprep.subr.bf16.mxu0 0
        %950 = vmatpush1.bf16.msra.mxu0 0
        %951 = vmatprep.subr.bf16.mxu0 0
        %952 = vmatpush1.bf16.msra.mxu0 0
        %953 = vmatprep.subr.bf16.mxu0 0
        %954 = vmatpush1.bf16.msra.mxu0 0
        %955 = vmatprep.subr.bf16.mxu0 0
        %956 = vmatpush1.bf16.msra.mxu0 0
        %957 = vmatprep.subr.bf16.mxu0 0
        %958 = vmatpush1.bf16.msra.mxu0 0
        %959 = vmatprep.subr.bf16.mxu0 0
        %960 = vmatpush1.bf16.msra.mxu0 0
        %961 = vmatprep.subr.bf16.mxu0 0
        %962 = vmatpush1.bf16.msra.mxu0 0
        %963 = vmatprep.subr.bf16.mxu0 0
        %964 = vmatpush1.bf16.msra.mxu0 0
        %965 = vmatprep.subr.bf16.mxu0 0
        %966 = vmatpush1.bf16.msra.mxu0 0
        %967 = vmatprep.subr.bf16.mxu0 0
        %968 = vmatpush1.bf16.msra.mxu0 0
        %969 = vmatprep.subr.bf16.mxu0 0
        %970 = vmatpush1.bf16.msra.mxu0 0
        %971 = vmatprep.mubr.bf16.mxu0 0
        %972 = vmatmul.mubr.bf16.gmra.mrb[0].mxu0 %v937
        %v973 = vpop.f32.mrb[0].mxu0
        %v974 = vadd.f32 0.0, %v973
        %v975 = vpop.f32.mrb[0].mxu0
        %v976 = vpop.f32.mrb[0].mxu0
        %v977 = vadd.f32 0.0, %v976
        %v978 = vpop.f32.mrb[0].mxu0
        %979 = vdwg.mxu0
        %980 = vrot.lane.b32.xlu0 %v486, 112
        %v981 = vpop.permute.xlu0 %980
        %982 = vrot.lane.b32.xlu0 %v486, 80
        %v983 = vpop.permute.xlu0 %982
        %v985 = vsel %vm491, %v981, 0
        %v988 = vsel %vm491, %v983, 0
        %990 = vmatprep.subr.bf16.mxu0 0
        %991 = vmatpush1.bf16.xpose.msra.mxu0 %v988
        %992 = vmatprep.subr.bf16.mxu0 0
        %993 = vmatpush1.bf16.xpose.msra.mxu0 0
        %994 = vmatprep.subr.bf16.mxu0 0
        %995 = vmatpush1.bf16.xpose.msra.mxu0 0
        %996 = vmatprep.subr.bf16.mxu0 0
        %997 = vmatpush1.bf16.xpose.msra.mxu0 0
        %998 = vmatprep.subr.bf16.mxu0 0
        %999 = vmatpush1.bf16.xpose.msra.mxu0 0
        %1000 = vmatprep.subr.bf16.mxu0 0
        %1001 = vmatpush1.bf16.xpose.msra.mxu0 0
        %1002 = vmatprep.subr.bf16.mxu0 0
        %1003 = vmatpush1.bf16.xpose.msra.mxu0 0
        %1004 = vmatprep.subr.bf16.mxu0 0
        %1005 = vmatpush1.bf16.xpose.msra.mxu0 0
        %1006 = vmatprep.subr.bf16.mxu0 0
        %1007 = vmatpush1.bf16.xpose.msra.mxu0 0
        %1008 = vmatprep.subr.bf16.mxu0 0
        %1009 = vmatpush1.bf16.xpose.msra.mxu0 0
        %1010 = vmatprep.subr.bf16.mxu0 0
        %1011 = vmatpush1.bf16.xpose.msra.mxu0 0
        %1012 = vmatprep.subr.bf16.mxu0 0
        %1013 = vmatpush1.bf16.xpose.msra.mxu0 0
        %1014 = vmatprep.subr.bf16.mxu0 0
        %1015 = vmatpush1.bf16.xpose.msra.mxu0 0
        %1016 = vmatprep.subr.bf16.mxu0 0
        %1017 = vmatpush1.bf16.xpose.msra.mxu0 0
        %1018 = vmatprep.subr.bf16.mxu0 0
        %1019 = vmatpush1.bf16.xpose.msra.mxu0 0
        %1020 = vmatprep.subr.bf16.mxu0 0
        %1021 = vmatpush1.bf16.xpose.msra.mxu0 0
        %1022 = vmatprep.mubr.bf16.mxu0 0
        %1023 = vmatmul.mubr.bf16.gmra.mrb[0].mxu0 %v985
        %v1024 = vpop.f32.mrb[0].mxu0
        %v1025 = vadd.f32 0.0, %v1024
        %v1026 = vpop.f32.mrb[0].mxu0
        %v1027 = vpop.f32.mrb[0].mxu0
        %v1028 = vadd.f32 0.0, %v1027
        %v1029 = vpop.f32.mrb[0].mxu0
        %1030 = vdwg.mxu0
        %1031 = vrot.lane.b32.xlu0 %v487, 112
        %v1032 = vpop.permute.xlu0 %1031
        %1033 = vrot.lane.b32.xlu0 %v487, 80
        %v1034 = vpop.permute.xlu0 %1033
        %v1036 = vsel %vm491, %v1032, 0
        %v1039 = vsel %vm491, %v1034, 0
        %1041 = vmatprep.subr.bf16.mxu0 0
        %1042 = vmatpush1.bf16.xpose.msra.mxu0 %v1039
        %1043 = vmatprep.subr.bf16.mxu0 0
        %1044 = vmatpush1.bf16.xpose.msra.mxu0 0
        %1045 = vmatprep.subr.bf16.mxu0 0
        %1046 = vmatpush1.bf16.xpose.msra.mxu0 0
        %1047 = vmatprep.subr.bf16.mxu0 0
        %1048 = vmatpush1.bf16.xpose.msra.mxu0 0
        %1049 = vmatprep.subr.bf16.mxu0 0
        %1050 = vmatpush1.bf16.xpose.msra.mxu0 0
        %1051 = vmatprep.subr.bf16.mxu0 0
        %1052 = vmatpush1.bf16.xpose.msra.mxu0 0
        %1053 = vmatprep.subr.bf16.mxu0 0
        %1054 = vmatpush1.bf16.xpose.msra.mxu0 0
        %1055 = vmatprep.subr.bf16.mxu0 0
        %1056 = vmatpush1.bf16.xpose.msra.mxu0 0
        %1057 = vmatprep.subr.bf16.mxu0 0
        %1058 = vmatpush1.bf16.xpose.msra.mxu0 0
        %1059 = vmatprep.subr.bf16.mxu0 0
        %1060 = vmatpush1.bf16.xpose.msra.mxu0 0
        %1061 = vmatprep.subr.bf16.mxu0 0
        %1062 = vmatpush1.bf16.xpose.msra.mxu0 0
        %1063 = vmatprep.subr.bf16.mxu0 0
        %1064 = vmatpush1.bf16.xpose.msra.mxu0 0
        %1065 = vmatprep.subr.bf16.mxu0 0
        %1066 = vmatpush1.bf16.xpose.msra.mxu0 0
        %1067 = vmatprep.subr.bf16.mxu0 0
        %1068 = vmatpush1.bf16.xpose.msra.mxu0 0
        %1069 = vmatprep.subr.bf16.mxu0 0
        %1070 = vmatpush1.bf16.xpose.msra.mxu0 0
        %1071 = vmatprep.subr.bf16.mxu0 0
        %1072 = vmatpush1.bf16.xpose.msra.mxu0 0
        %1073 = vmatprep.mubr.bf16.mxu0 0
        %1074 = vmatmul.mubr.bf16.gmra.mrb[0].mxu0 %v1036
        %v1075 = vpop.f32.mrb[0].mxu0
        %v1076 = vadd.f32 0.0, %v1075
        %v1077 = vpop.f32.mrb[0].mxu0
        %v1078 = vpop.f32.mrb[0].mxu0
        %v1079 = vadd.f32 0.0, %v1078
        %v1080 = vpop.f32.mrb[0].mxu0
        %1081 = vdwg.mxu0
        %v1082 = vmul.f32 %v1025, 0.35355338
        %v1083 = vmul.f32 %v1028, 0.35355338
        %v1084 = vmul.f32 %v1076, 0.35355338
        %v1085 = vmul.f32 %v1079, 0.35355338
        %v1086 = vsel %vm593, %v1082, -inf
        %1087 = vmax.xlane.f32.xlu0 %v1086
        %v1088 = vpop.xlane.xlu0 %1087
        %v1089 = vsel %vm593, %v1083, -inf
        %1090 = vmax.xlane.f32.xlu0 %v1089
        %v1091 = vpop.xlane.xlu0 %1090
        %v1092 = vsel %vm593, %v1084, -inf
        %1093 = vmax.xlane.f32.xlu0 %v1092
        %v1094 = vpop.xlane.xlu0 %1093
        %v1095 = vsel %vm593, %v1085, -inf
        %1096 = vmax.xlane.f32.xlu0 %v1095
        %v1097 = vpop.xlane.xlu0 %1096
        %v1098 = vsub.f32 %v1082, %v1088
        %v1099 = vsub.f32 %v1083, %v1091
        %v1100 = vsub.f32 %v1084, %v1094
        %v1101 = vsub.f32 %v1085, %v1097
        %v1102 = vmul.f32 %v1098, 1.442695
        %v1103 = vpow.pop %v1102
        %v1104 = vmul.f32 %v1099, 1.442695
        %v1105 = vpow.pop %v1104
        %v1106 = vmul.f32 %v1100, 1.442695
        %v1107 = vpow.pop %v1106
        %v1108 = vmul.f32 %v1101, 1.442695
        %v1109 = vpow.pop %v1108
        %v1110 = vsel %vm593, %v1103, 0.0
        %1111 = vadd.xlane.f32.xlu0 %v1110
        %v1112 = vpop.xlane.xlu0 %1111
        %v1113 = vsel %vm593, %v1105, 0.0
        %1114 = vadd.xlane.f32.xlu0 %v1113
        %v1115 = vpop.xlane.xlu0 %1114
        %v1116 = vsel %vm593, %v1107, 0.0
        %1117 = vadd.xlane.f32.xlu0 %v1116
        %v1118 = vpop.xlane.xlu0 %1117
        %v1119 = vsel %vm593, %v1109, 0.0
        %1120 = vadd.xlane.f32.xlu0 %v1119
        %v1121 = vpop.xlane.xlu0 %1120
        %v1122 = vrcp.pop %v1112
        %v1123 = vrcp.pop %v1115
        %v1124 = vrcp.pop %v1118
        %v1125 = vrcp.pop %v1121
        %v1126 = vmul.f32 %v1103, %v1122
        %v1127 = vmul.f32 %v1105, %v1123
        %v1128 = vmul.f32 %v1107, %v1124
        %v1129 = vmul.f32 %v1109, %v1125
        %v1130 = vpack.c.bf16 %v1127, %v1126
        %v1131 = vpack.c.bf16 %v1129, %v1128
        %1132 = vrot.lane.b32.xlu0 %v486, 48
        %v1133 = vpop.permute.xlu0 %1132
        %v1136 = vsel %vm593, %v1130, 0
        %1138 = vmatprep.subr.bf16.mxu0 0
        %1139 = vmatpush1.bf16.msra.mxu0 %v1133
        %1140 = vmatprep.subr.bf16.mxu0 0
        %1141 = vmatpush1.bf16.msra.mxu0 0
        %1142 = vmatprep.subr.bf16.mxu0 0
        %1143 = vmatpush1.bf16.msra.mxu0 0
        %1144 = vmatprep.subr.bf16.mxu0 0
        %1145 = vmatpush1.bf16.msra.mxu0 0
        %1146 = vmatprep.subr.bf16.mxu0 0
        %1147 = vmatpush1.bf16.msra.mxu0 0
        %1148 = vmatprep.subr.bf16.mxu0 0
        %1149 = vmatpush1.bf16.msra.mxu0 0
        %1150 = vmatprep.subr.bf16.mxu0 0
        %1151 = vmatpush1.bf16.msra.mxu0 0
        %1152 = vmatprep.subr.bf16.mxu0 0
        %1153 = vmatpush1.bf16.msra.mxu0 0
        %1154 = vmatprep.subr.bf16.mxu0 0
        %1155 = vmatpush1.bf16.msra.mxu0 0
        %1156 = vmatprep.subr.bf16.mxu0 0
        %1157 = vmatpush1.bf16.msra.mxu0 0
        %1158 = vmatprep.subr.bf16.mxu0 0
        %1159 = vmatpush1.bf16.msra.mxu0 0
        %1160 = vmatprep.subr.bf16.mxu0 0
        %1161 = vmatpush1.bf16.msra.mxu0 0
        %1162 = vmatprep.subr.bf16.mxu0 0
        %1163 = vmatpush1.bf16.msra.mxu0 0
        %1164 = vmatprep.subr.bf16.mxu0 0
        %1165 = vmatpush1.bf16.msra.mxu0 0
        %1166 = vmatprep.subr.bf16.mxu0 0
        %1167 = vmatpush1.bf16.msra.mxu0 0
        %1168 = vmatprep.subr.bf16.mxu0 0
        %1169 = vmatpush1.bf16.msra.mxu0 0
        %1170 = vmatprep.mubr.bf16.mxu0 0
        %1171 = vmatmul.mubr.bf16.gmra.mrb[0].mxu0 %v1136
        %v1172 = vpop.f32.mrb[0].mxu0
        %v1173 = vadd.f32 0.0, %v1172
        %v1174 = vpop.f32.mrb[0].mxu0
        %v1175 = vpop.f32.mrb[0].mxu0
        %v1176 = vadd.f32 0.0, %v1175
        %v1177 = vpop.f32.mrb[0].mxu0
        %1178 = vdwg.mxu0
        %1179 = vrot.lane.b32.xlu0 %v487, 48
        %v1180 = vpop.permute.xlu0 %1179
        %v1183 = vsel %vm593, %v1131, 0
        %1185 = vmatprep.subr.bf16.mxu0 0
        %1186 = vmatpush1.bf16.msra.mxu0 %v1180
        %1187 = vmatprep.subr.bf16.mxu0 0
        %1188 = vmatpush1.bf16.msra.mxu0 0
        %1189 = vmatprep.subr.bf16.mxu0 0
        %1190 = vmatpush1.bf16.msra.mxu0 0
        %1191 = vmatprep.subr.bf16.mxu0 0
        %1192 = vmatpush1.bf16.msra.mxu0 0
        %1193 = vmatprep.subr.bf16.mxu0 0
        %1194 = vmatpush1.bf16.msra.mxu0 0
        %1195 = vmatprep.subr.bf16.mxu0 0
        %1196 = vmatpush1.bf16.msra.mxu0 0
        %1197 = vmatprep.subr.bf16.mxu0 0
        %1198 = vmatpush1.bf16.msra.mxu0 0
        %1199 = vmatprep.subr.bf16.mxu0 0
        %1200 = vmatpush1.bf16.msra.mxu0 0
        %1201 = vmatprep.subr.bf16.mxu0 0
        %1202 = vmatpush1.bf16.msra.mxu0 0
        %1203 = vmatprep.subr.bf16.mxu0 0
        %1204 = vmatpush1.bf16.msra.mxu0 0
        %1205 = vmatprep.subr.bf16.mxu0 0
        %1206 = vmatpush1.bf16.msra.mxu0 0
        %1207 = vmatprep.subr.bf16.mxu0 0
        %1208 = vmatpush1.bf16.msra.mxu0 0
        %1209 = vmatprep.subr.bf16.mxu0 0
        %1210 = vmatpush1.bf16.msra.mxu0 0
        %1211 = vmatprep.subr.bf16.mxu0 0
        %1212 = vmatpush1.bf16.msra.mxu0 0
        %1213 = vmatprep.subr.bf16.mxu0 0
        %1214 = vmatpush1.bf16.msra.mxu0 0
        %1215 = vmatprep.subr.bf16.mxu0 0
        %1216 = vmatpush1.bf16.msra.mxu0 0
        %1217 = vmatprep.mubr.bf16.mxu0 0
        %1218 = vmatmul.mubr.bf16.gmra.mrb[0].mxu0 %v1183
        %v1219 = vpop.f32.mrb[0].mxu0
        %v1220 = vadd.f32 0.0, %v1219
        %v1221 = vpop.f32.mrb[0].mxu0
        %v1222 = vpop.f32.mrb[0].mxu0
        %v1223 = vadd.f32 0.0, %v1222
        %v1224 = vpop.f32.mrb[0].mxu0
        %1225 = vdwg.mxu0
        %1226 = vrot.lane.b32.xlu0 %v486, 104
        %v1227 = vpop.permute.xlu0 %1226
        %1228 = vrot.lane.b32.xlu0 %v486, 72
        %v1229 = vpop.permute.xlu0 %1228
        %v1231 = vsel %vm491, %v1227, 0
        %v1234 = vsel %vm491, %v1229, 0
        %1236 = vmatprep.subr.bf16.mxu0 0
        %1237 = vmatpush1.bf16.xpose.msra.mxu0 %v1234
        %1238 = vmatprep.subr.bf16.mxu0 0
        %1239 = vmatpush1.bf16.xpose.msra.mxu0 0
        %1240 = vmatprep.subr.bf16.mxu0 0
        %1241 = vmatpush1.bf16.xpose.msra.mxu0 0
        %1242 = vmatprep.subr.bf16.mxu0 0
        %1243 = vmatpush1.bf16.xpose.msra.mxu0 0
        %1244 = vmatprep.subr.bf16.mxu0 0
        %1245 = vmatpush1.bf16.xpose.msra.mxu0 0
        %1246 = vmatprep.subr.bf16.mxu0 0
        %1247 = vmatpush1.bf16.xpose.msra.mxu0 0
        %1248 = vmatprep.subr.bf16.mxu0 0
        %1249 = vmatpush1.bf16.xpose.msra.mxu0 0
        %1250 = vmatprep.subr.bf16.mxu0 0
        %1251 = vmatpush1.bf16.xpose.msra.mxu0 0
        %1252 = vmatprep.subr.bf16.mxu0 0
        %1253 = vmatpush1.bf16.xpose.msra.mxu0 0
        %1254 = vmatprep.subr.bf16.mxu0 0
        %1255 = vmatpush1.bf16.xpose.msra.mxu0 0
        %1256 = vmatprep.subr.bf16.mxu0 0
        %1257 = vmatpush1.bf16.xpose.msra.mxu0 0
        %1258 = vmatprep.subr.bf16.mxu0 0
        %1259 = vmatpush1.bf16.xpose.msra.mxu0 0
        %1260 = vmatprep.subr.bf16.mxu0 0
        %1261 = vmatpush1.bf16.xpose.msra.mxu0 0
        %1262 = vmatprep.subr.bf16.mxu0 0
        %1263 = vmatpush1.bf16.xpose.msra.mxu0 0
        %1264 = vmatprep.subr.bf16.mxu0 0
        %1265 = vmatpush1.bf16.xpose.msra.mxu0 0
        %1266 = vmatprep.subr.bf16.mxu0 0
        %1267 = vmatpush1.bf16.xpose.msra.mxu0 0
        %1268 = vmatprep.mubr.bf16.mxu0 0
        %1269 = vmatmul.mubr.bf16.gmra.mrb[0].mxu0 %v1231
        %v1270 = vpop.f32.mrb[0].mxu0
        %v1271 = vadd.f32 0.0, %v1270
        %v1272 = vpop.f32.mrb[0].mxu0
        %v1273 = vpop.f32.mrb[0].mxu0
        %v1274 = vadd.f32 0.0, %v1273
        %v1275 = vpop.f32.mrb[0].mxu0
        %1276 = vdwg.mxu0
        %1277 = vrot.lane.b32.xlu0 %v487, 104
        %v1278 = vpop.permute.xlu0 %1277
        %1279 = vrot.lane.b32.xlu0 %v487, 72
        %v1280 = vpop.permute.xlu0 %1279
        %v1282 = vsel %vm491, %v1278, 0
        %v1285 = vsel %vm491, %v1280, 0
        %1287 = vmatprep.subr.bf16.mxu0 0
        %1288 = vmatpush1.bf16.xpose.msra.mxu0 %v1285
        %1289 = vmatprep.subr.bf16.mxu0 0
        %1290 = vmatpush1.bf16.xpose.msra.mxu0 0
        %1291 = vmatprep.subr.bf16.mxu0 0
        %1292 = vmatpush1.bf16.xpose.msra.mxu0 0
        %1293 = vmatprep.subr.bf16.mxu0 0
        %1294 = vmatpush1.bf16.xpose.msra.mxu0 0
        %1295 = vmatprep.subr.bf16.mxu0 0
        %1296 = vmatpush1.bf16.xpose.msra.mxu0 0
        %1297 = vmatprep.subr.bf16.mxu0 0
        %1298 = vmatpush1.bf16.xpose.msra.mxu0 0
        %1299 = vmatprep.subr.bf16.mxu0 0
        %1300 = vmatpush1.bf16.xpose.msra.mxu0 0
        %1301 = vmatprep.subr.bf16.mxu0 0
        %1302 = vmatpush1.bf16.xpose.msra.mxu0 0
        %1303 = vmatprep.subr.bf16.mxu0 0
        %1304 = vmatpush1.bf16.xpose.msra.mxu0 0
        %1305 = vmatprep.subr.bf16.mxu0 0
        %1306 = vmatpush1.bf16.xpose.msra.mxu0 0
        %1307 = vmatprep.subr.bf16.mxu0 0
        %1308 = vmatpush1.bf16.xpose.msra.mxu0 0
        %1309 = vmatprep.subr.bf16.mxu0 0
        %1310 = vmatpush1.bf16.xpose.msra.mxu0 0
        %1311 = vmatprep.subr.bf16.mxu0 0
        %1312 = vmatpush1.bf16.xpose.msra.mxu0 0
        %1313 = vmatprep.subr.bf16.mxu0 0
        %1314 = vmatpush1.bf16.xpose.msra.mxu0 0
        %1315 = vmatprep.subr.bf16.mxu0 0
        %1316 = vmatpush1.bf16.xpose.msra.mxu0 0
        %1317 = vmatprep.subr.bf16.mxu0 0
        %1318 = vmatpush1.bf16.xpose.msra.mxu0 0
        %1319 = vmatprep.mubr.bf16.mxu0 0
        %1320 = vmatmul.mubr.bf16.gmra.mrb[0].mxu0 %v1282
        %v1321 = vpop.f32.mrb[0].mxu0
        %v1322 = vadd.f32 0.0, %v1321
        %v1323 = vpop.f32.mrb[0].mxu0
        %v1324 = vpop.f32.mrb[0].mxu0
        %v1325 = vadd.f32 0.0, %v1324
        %v1326 = vpop.f32.mrb[0].mxu0
        %1327 = vdwg.mxu0
        %v1328 = vmul.f32 %v1271, 0.35355338
        %v1329 = vmul.f32 %v1274, 0.35355338
        %v1330 = vmul.f32 %v1322, 0.35355338
        %v1331 = vmul.f32 %v1325, 0.35355338
        %v1332 = vsel %vm593, %v1328, -inf
        %1333 = vmax.xlane.f32.xlu0 %v1332
        %v1334 = vpop.xlane.xlu0 %1333
        %v1335 = vsel %vm593, %v1329, -inf
        %1336 = vmax.xlane.f32.xlu0 %v1335
        %v1337 = vpop.xlane.xlu0 %1336
        %v1338 = vsel %vm593, %v1330, -inf
        %1339 = vmax.xlane.f32.xlu0 %v1338
        %v1340 = vpop.xlane.xlu0 %1339
        %v1341 = vsel %vm593, %v1331, -inf
        %1342 = vmax.xlane.f32.xlu0 %v1341
        %v1343 = vpop.xlane.xlu0 %1342
        %v1344 = vsub.f32 %v1328, %v1334
        %v1345 = vsub.f32 %v1329, %v1337
        %v1346 = vsub.f32 %v1330, %v1340
        %v1347 = vsub.f32 %v1331, %v1343
        %v1348 = vmul.f32 %v1344, 1.442695
        %v1349 = vpow.pop %v1348
        %v1350 = vmul.f32 %v1345, 1.442695
        %v1351 = vpow.pop %v1350
        %v1352 = vmul.f32 %v1346, 1.442695
        %v1353 = vpow.pop %v1352
        %v1354 = vmul.f32 %v1347, 1.442695
        %v1355 = vpow.pop %v1354
        %v1356 = vsel %vm593, %v1349, 0.0
        %1357 = vadd.xlane.f32.xlu0 %v1356
        %v1358 = vpop.xlane.xlu0 %1357
        %v1359 = vsel %vm593, %v1351, 0.0
        %1360 = vadd.xlane.f32.xlu0 %v1359
        %v1361 = vpop.xlane.xlu0 %1360
        %v1362 = vsel %vm593, %v1353, 0.0
        %1363 = vadd.xlane.f32.xlu0 %v1362
        %v1364 = vpop.xlane.xlu0 %1363
        %v1365 = vsel %vm593, %v1355, 0.0
        %1366 = vadd.xlane.f32.xlu0 %v1365
        %v1367 = vpop.xlane.xlu0 %1366
        %v1368 = vrcp.pop %v1358
        %v1369 = vrcp.pop %v1361
        %v1370 = vrcp.pop %v1364
        %v1371 = vrcp.pop %v1367
        %v1372 = vmul.f32 %v1349, %v1368
        %v1373 = vmul.f32 %v1351, %v1369
        %v1374 = vmul.f32 %v1353, %v1370
        %v1375 = vmul.f32 %v1355, %v1371
        %v1376 = vpack.c.bf16 %v1373, %v1372
        %v1377 = vpack.c.bf16 %v1375, %v1374
        %1378 = vrot.lane.b32.xlu0 %v486, 40
        %v1379 = vpop.permute.xlu0 %1378
        %v1382 = vsel %vm593, %v1376, 0
        %1384 = vmatprep.subr.bf16.mxu0 0
        %1385 = vmatpush1.bf16.msra.mxu0 %v1379
        %1386 = vmatprep.subr.bf16.mxu0 0
        %1387 = vmatpush1.bf16.msra.mxu0 0
        %1388 = vmatprep.subr.bf16.mxu0 0
        %1389 = vmatpush1.bf16.msra.mxu0 0
        %1390 = vmatprep.subr.bf16.mxu0 0
        %1391 = vmatpush1.bf16.msra.mxu0 0
        %1392 = vmatprep.subr.bf16.mxu0 0
        %1393 = vmatpush1.bf16.msra.mxu0 0
        %1394 = vmatprep.subr.bf16.mxu0 0
        %1395 = vmatpush1.bf16.msra.mxu0 0
        %1396 = vmatprep.subr.bf16.mxu0 0
        %1397 = vmatpush1.bf16.msra.mxu0 0
        %1398 = vmatprep.subr.bf16.mxu0 0
        %1399 = vmatpush1.bf16.msra.mxu0 0
        %1400 = vmatprep.subr.bf16.mxu0 0
        %1401 = vmatpush1.bf16.msra.mxu0 0
        %1402 = vmatprep.subr.bf16.mxu0 0
        %1403 = vmatpush1.bf16.msra.mxu0 0
        %1404 = vmatprep.subr.bf16.mxu0 0
        %1405 = vmatpush1.bf16.msra.mxu0 0
        %1406 = vmatprep.subr.bf16.mxu0 0
        %1407 = vmatpush1.bf16.msra.mxu0 0
        %1408 = vmatprep.subr.bf16.mxu0 0
        %1409 = vmatpush1.bf16.msra.mxu0 0
        %1410 = vmatprep.subr.bf16.mxu0 0
        %1411 = vmatpush1.bf16.msra.mxu0 0
        %1412 = vmatprep.subr.bf16.mxu0 0
        %1413 = vmatpush1.bf16.msra.mxu0 0
        %1414 = vmatprep.subr.bf16.mxu0 0
        %1415 = vmatpush1.bf16.msra.mxu0 0
        %1416 = vmatprep.mubr.bf16.mxu0 0
        %1417 = vmatmul.mubr.bf16.gmra.mrb[0].mxu0 %v1382
        %v1418 = vpop.f32.mrb[0].mxu0
        %v1419 = vadd.f32 0.0, %v1418
        %v1420 = vpop.f32.mrb[0].mxu0
        %v1421 = vpop.f32.mrb[0].mxu0
        %v1422 = vadd.f32 0.0, %v1421
        %v1423 = vpop.f32.mrb[0].mxu0
        %1424 = vdwg.mxu0
        %1425 = vrot.lane.b32.xlu0 %v487, 40
        %v1426 = vpop.permute.xlu0 %1425
        %v1429 = vsel %vm593, %v1377, 0
        %1431 = vmatprep.subr.bf16.mxu0 0
        %1432 = vmatpush1.bf16.msra.mxu0 %v1426
        %1433 = vmatprep.subr.bf16.mxu0 0
        %1434 = vmatpush1.bf16.msra.mxu0 0
        %1435 = vmatprep.subr.bf16.mxu0 0
        %1436 = vmatpush1.bf16.msra.mxu0 0
        %1437 = vmatprep.subr.bf16.mxu0 0
        %1438 = vmatpush1.bf16.msra.mxu0 0
        %1439 = vmatprep.subr.bf16.mxu0 0
        %1440 = vmatpush1.bf16.msra.mxu0 0
        %1441 = vmatprep.subr.bf16.mxu0 0
        %1442 = vmatpush1.bf16.msra.mxu0 0
        %1443 = vmatprep.subr.bf16.mxu0 0
        %1444 = vmatpush1.bf16.msra.mxu0 0
        %1445 = vmatprep.subr.bf16.mxu0 0
        %1446 = vmatpush1.bf16.msra.mxu0 0
        %1447 = vmatprep.subr.bf16.mxu0 0
        %1448 = vmatpush1.bf16.msra.mxu0 0
        %1449 = vmatprep.subr.bf16.mxu0 0
        %1450 = vmatpush1.bf16.msra.mxu0 0
        %1451 = vmatprep.subr.bf16.mxu0 0
        %1452 = vmatpush1.bf16.msra.mxu0 0
        %1453 = vmatprep.subr.bf16.mxu0 0
        %1454 = vmatpush1.bf16.msra.mxu0 0
        %1455 = vmatprep.subr.bf16.mxu0 0
        %1456 = vmatpush1.bf16.msra.mxu0 0
        %1457 = vmatprep.subr.bf16.mxu0 0
        %1458 = vmatpush1.bf16.msra.mxu0 0
        %1459 = vmatprep.subr.bf16.mxu0 0
        %1460 = vmatpush1.bf16.msra.mxu0 0
        %1461 = vmatprep.subr.bf16.mxu0 0
        %1462 = vmatpush1.bf16.msra.mxu0 0
        %1463 = vmatprep.mubr.bf16.mxu0 0
        %1464 = vmatmul.mubr.bf16.gmra.mrb[0].mxu0 %v1429
        %v1465 = vpop.f32.mrb[0].mxu0
        %v1466 = vadd.f32 0.0, %v1465
        %v1467 = vpop.f32.mrb[0].mxu0
        %v1468 = vpop.f32.mrb[0].mxu0
        %v1469 = vadd.f32 0.0, %v1468
        %v1470 = vpop.f32.mrb[0].mxu0
        %1471 = vdwg.mxu0
        %1476 = vrot.lane.b32.xlu0 %v927, 8
        %v1477 = vpop.permute.xlu0 %1476
        %1478 = vrot.lane.b32.xlu0 %v930, 8
        %v1479 = vpop.permute.xlu0 %1478
        %1480 = vrot.lane.b32.xlu0 %v974, 8
        %v1481 = vpop.permute.xlu0 %1480
        %1482 = vrot.lane.b32.xlu0 %v977, 8
        %v1483 = vpop.permute.xlu0 %1482
        %1492 = vrot.lane.b32.xlu0 %v1173, 16
        %v1493 = vpop.permute.xlu0 %1492
        %1494 = vrot.lane.b32.xlu0 %v1176, 16
        %v1495 = vpop.permute.xlu0 %1494
        %1496 = vrot.lane.b32.xlu0 %v1220, 16
        %v1497 = vpop.permute.xlu0 %1496
        %1498 = vrot.lane.b32.xlu0 %v1223, 16
        %v1499 = vpop.permute.xlu0 %1498
        %1508 = vrot.lane.b32.xlu0 %v1419, 24
        %v1509 = vpop.permute.xlu0 %1508
        %1510 = vrot.lane.b32.xlu0 %v1422, 24
        %v1511 = vpop.permute.xlu0 %1510
        %1512 = vrot.lane.b32.xlu0 %v1466, 24
        %v1513 = vpop.permute.xlu0 %1512
        %1514 = vrot.lane.b32.xlu0 %v1469, 24
        %v1515 = vpop.permute.xlu0 %1514
        %v1520 = vsel %vm491, %v681, %v1477
        %v1521 = vsel %vm491, %v684, %v1479
        %v1522 = vsel %vm491, %v728, %v1481
        %v1523 = vsel %vm491, %v731, %v1483
        %v1524 = vsel %vm593, %v1520, %v1493
        %v1525 = vsel %vm593, %v1521, %v1495
        %v1526 = vsel %vm593, %v1522, %v1497
        %v1527 = vsel %vm593, %v1523, %v1499
        %vm1528 = vcmask 195584
        %v1529 = vsel %vm1528, %v1524, %v1509
        %v1530 = vsel %vm1528, %v1525, %v1511
        %v1531 = vsel %vm1528, %v1526, %v1513
        %v1532 = vsel %vm1528, %v1527, %v1515
        %v1533 = vpack.c.bf16 %v1530, %v1529
        %v1534 = vpack.c.bf16 %v1532, %v1531
        %v1535 = vlaneseq
        %v1536 = vshrl.u32 %v1535, 7
        %v1537 = vsub.s32 0, %v1536
        %v1538 = vrot.slane %v415, %v1537
        %v1543 = vunpack.c.l.b16 %v398
        %v1544 = vunpack.c.l.b16 %v399
        %v1545 = vunpack.c.l.b16 %v400
        %v1546 = vunpack.c.l.b16 %v401
        %v1547 = vpack.c.b16 %v1544, %v1543
        %v1548 = vpack.c.b16 %v1546, %v1545
        %v1552 = vsel %vm430, %v1533, 0
        %v1555 = vsel %vm430, %v1534, 0
        %1557 = vmatprep.subr.bf16.mxu0 0
        %1558 = vmatpush1.bf16.msra.mxu0 %v1547
        %1559 = vmatprep.subr.bf16.mxu0 0
        %1560 = vmatpush1.bf16.msra.mxu0 %v1548
        %1561 = vmatprep.subr.bf16.mxu0 0
        %1562 = vmatpush1.bf16.msra.mxu0 0
        %1563 = vmatprep.subr.bf16.mxu0 0
        %1564 = vmatpush1.bf16.msra.mxu0 0
        %1565 = vmatprep.subr.bf16.mxu0 0
        %1566 = vmatpush1.bf16.msra.mxu0 0
        %1567 = vmatprep.subr.bf16.mxu0 0
        %1568 = vmatpush1.bf16.msra.mxu0 0
        %1569 = vmatprep.subr.bf16.mxu0 0
        %1570 = vmatpush1.bf16.msra.mxu0 0
        %1571 = vmatprep.subr.bf16.mxu0 0
        %1572 = vmatpush1.bf16.msra.mxu0 0
        %1573 = vmatprep.subr.bf16.mxu0 0
        %1574 = vmatpush1.bf16.msra.mxu0 0
        %1575 = vmatprep.subr.bf16.mxu0 0
        %1576 = vmatpush1.bf16.msra.mxu0 0
        %1577 = vmatprep.subr.bf16.mxu0 0
        %1578 = vmatpush1.bf16.msra.mxu0 0
        %1579 = vmatprep.subr.bf16.mxu0 0
        %1580 = vmatpush1.bf16.msra.mxu0 0
        %1581 = vmatprep.subr.bf16.mxu0 0
        %1582 = vmatpush1.bf16.msra.mxu0 0
        %1583 = vmatprep.subr.bf16.mxu0 0
        %1584 = vmatpush1.bf16.msra.mxu0 0
        %1585 = vmatprep.subr.bf16.mxu0 0
        %1586 = vmatpush1.bf16.msra.mxu0 0
        %1587 = vmatprep.subr.bf16.mxu0 0
        %1588 = vmatpush1.bf16.msra.mxu0 0
        %1589 = vmatprep.mubr.bf16.mxu0 0
        %1590 = vmatmul.mubr.bf16.gmra.mrb[0].mxu0 %v1552
        %v1591 = vpop.f32.mrb[0].mxu0
        %v1592 = vadd.f32 %v1538, %v1591
        %v1593 = vpop.f32.mrb[0].mxu0
        %v1594 = vpop.f32.mrb[0].mxu0
        %v1595 = vadd.f32 %v1538, %v1594
        %v1596 = vpop.f32.mrb[0].mxu0
        %1597 = vmatprep.mubr.bf16.mxu0 0
        %1598 = vmatmul.mubr.bf16.gmra.mrb[0].mxu0 %v1555
        %v1599 = vpop.f32.mrb[0].mxu0
        %v1600 = vadd.f32 %v1538, %v1599
        %v1601 = vpop.f32.mrb[0].mxu0
        %v1602 = vpop.f32.mrb[0].mxu0
        %v1603 = vadd.f32 %v1538, %v1602
        %v1604 = vpop.f32.mrb[0].mxu0
        %1605 = vdwg.mxu0
        %v1606 = vadd.f32 %v390, %v1592
        %v1607 = vadd.f32 %v391, %v1595
        %v1608 = vadd.f32 %v392, %v1600
        %v1609 = vadd.f32 %v393, %v1603
        %v1610 = vsel %vm430, %v1606, 0.0
        %v1611 = vsel %vm430, %v1607, 0.0
        %v1612 = vadd.f32 %v1610, %v1611
        %v1613 = vrot.slane %v1612, 4
        %v1614 = vadd.f32 %v1612, %v1613
        %v1615 = vrot.slane %v1614, 2
        %v1616 = vadd.f32 %v1614, %v1615
        %v1617 = vrot.slane %v1616, 1
        %v1618 = vadd.f32 %v1616, %v1617
        %v1619 = vsel %vm430, %v1608, 0.0
        %v1620 = vsel %vm430, %v1609, 0.0
        %v1621 = vadd.f32 %v1619, %v1620
        %v1622 = vrot.slane %v1621, 4
        %v1623 = vadd.f32 %v1621, %v1622
        %v1624 = vrot.slane %v1623, 2
        %v1625 = vadd.f32 %v1623, %v1624
        %v1626 = vrot.slane %v1625, 1
        %v1627 = vadd.f32 %v1625, %v1626
        %v1628 = vrcp.pop 16.0
        %v1629 = vmul.f32 %v1618, %v1628
        %v1630 = vmul.f32 %v1627, %v1628
        %v1631 = vsub.f32 %v1606, %v1629
        %v1632 = vsub.f32 %v1607, %v1629
        %v1633 = vsub.f32 %v1608, %v1630
        %v1634 = vsub.f32 %v1609, %v1630
        %v1635 = vmul.f32 %v1631, %v1631
        %v1636 = vmul.f32 %v1632, %v1632
        %v1637 = vmul.f32 %v1633, %v1633
        %v1638 = vmul.f32 %v1634, %v1634
        %v1639 = vsel %vm430, %v1635, 0.0
        %v1640 = vsel %vm430, %v1636, 0.0
        %v1641 = vadd.f32 %v1639, %v1640
        %v1642 = vrot.slane %v1641, 4
        %v1643 = vadd.f32 %v1641, %v1642
        %v1644 = vrot.slane %v1643, 2
        %v1645 = vadd.f32 %v1643, %v1644
        %v1646 = vrot.slane %v1645, 1
        %v1647 = vadd.f32 %v1645, %v1646
        %v1648 = vsel %vm430, %v1637, 0.0
        %v1649 = vsel %vm430, %v1638, 0.0
        %v1650 = vadd.f32 %v1648, %v1649
        %v1651 = vrot.slane %v1650, 4
        %v1652 = vadd.f32 %v1650, %v1651
        %v1653 = vrot.slane %v1652, 2
        %v1654 = vadd.f32 %v1652, %v1653
        %v1655 = vrot.slane %v1654, 1
        %v1656 = vadd.f32 %v1654, %v1655
        %v1657 = vmul.f32 %v1647, %v1628
        %v1658 = vmul.f32 %v1656, %v1628
        %v1659 = vadd.f32 %v1657, 1e-05
        %v1660 = vadd.f32 %v1658, 1e-05
        %v1661 = vrsqrt.pop %v1659
        %v1662 = vrsqrt.pop %v1660
        %v1663 = vmul.f32 %v1631, %v1661
        %v1664 = vmul.f32 %v1632, %v1661
        %v1665 = vmul.f32 %v1633, %v1662
        %v1666 = vmul.f32 %v1634, %v1662
        %v1667 = vlaneseq
        %v1668 = vshrl.u32 %v1667, 7
        %v1669 = vsub.s32 1, %v1668
        %v1670 = vrot.slane %v415, %v1669
        %v1671 = vmul.f32 %v1663, %v1670
        %v1672 = vmul.f32 %v1664, %v1670
        %v1673 = vmul.f32 %v1665, %v1670
        %v1674 = vmul.f32 %v1666, %v1670
        %v1675 = vlaneseq
        %v1676 = vshrl.u32 %v1675, 7
        %v1677 = vsub.s32 2, %v1676
        %v1678 = vrot.slane %v415, %v1677
        %v1679 = vadd.f32 %v1671, %v1678
        %v1680 = vadd.f32 %v1672, %v1678
        %v1681 = vadd.f32 %v1673, %v1678
        %v1682 = vadd.f32 %v1674, %v1678
        %v1683 = vpack.c.bf16 %v1680, %v1679
        %v1684 = vpack.c.bf16 %v1682, %v1681
        %v1686 = vlaneseq
        %v1687 = vshrl.u32 %v1686, 7
        %v1688 = vsub.s32 0, %v1687
        %v1689 = vrot.slane %v406, %v1688
        %v1695 = vunpack.c.l.b16 %v402
        %v1696 = vunpack.c.l.b16 %v403
        %v1697 = vunpack.c.l.b16 %v404
        %v1698 = vunpack.c.l.b16 %v405
        %v1699 = vpack.c.b16 %v1696, %v1695
        %v1700 = vpack.c.b16 %v1698, %v1697
        %v1704 = vsel %vm430, %v1683, 0
        %v1707 = vsel %vm430, %v1684, 0
        %1709 = vmatprep.subr.bf16.mxu0 0
        %1710 = vmatpush1.bf16.msra.mxu0 %v1699
        %1711 = vmatprep.subr.bf16.mxu0 0
        %1712 = vmatpush1.bf16.msra.mxu0 %v1700
        %1713 = vmatprep.subr.bf16.mxu0 0
        %1714 = vmatpush1.bf16.msra.mxu0 0
        %1715 = vmatprep.subr.bf16.mxu0 0
        %1716 = vmatpush1.bf16.msra.mxu0 0
        %1717 = vmatprep.subr.bf16.mxu0 0
        %1718 = vmatpush1.bf16.msra.mxu0 0
        %1719 = vmatprep.subr.bf16.mxu0 0
        %1720 = vmatpush1.bf16.msra.mxu0 0
        %1721 = vmatprep.subr.bf16.mxu0 0
        %1722 = vmatpush1.bf16.msra.mxu0 0
        %1723 = vmatprep.subr.bf16.mxu0 0
        %1724 = vmatpush1.bf16.msra.mxu0 0
        %1725 = vmatprep.subr.bf16.mxu0 0
        %1726 = vmatpush1.bf16.msra.mxu0 0
        %1727 = vmatprep.subr.bf16.mxu0 0
        %1728 = vmatpush1.bf16.msra.mxu0 0
        %1729 = vmatprep.subr.bf16.mxu0 0
        %1730 = vmatpush1.bf16.msra.mxu0 0
        %1731 = vmatprep.subr.bf16.mxu0 0
        %1732 = vmatpush1.bf16.msra.mxu0 0
        %1733 = vmatprep.subr.bf16.mxu0 0
        %1734 = vmatpush1.bf16.msra.mxu0 0
        %1735 = vmatprep.subr.bf16.mxu0 0
        %1736 = vmatpush1.bf16.msra.mxu0 0
        %1737 = vmatprep.subr.bf16.mxu0 0
        %1738 = vmatpush1.bf16.msra.mxu0 0
        %1739 = vmatprep.subr.bf16.mxu0 0
        %1740 = vmatpush1.bf16.msra.mxu0 0
        %1741 = vmatprep.mubr.bf16.mxu0 0
        %1742 = vmatmul.mubr.bf16.gmra.mrb[0].mxu0 %v1704
        %v1743 = vpop.f32.mrb[0].mxu0
        %v1744 = vadd.f32 %v1689, %v1743
        %v1745 = vpop.f32.mrb[0].mxu0
        %v1746 = vpop.f32.mrb[0].mxu0
        %v1747 = vadd.f32 %v1689, %v1746
        %v1748 = vpop.f32.mrb[0].mxu0
        %1749 = vmatprep.mubr.bf16.mxu0 0
        %1750 = vmatmul.mubr.bf16.gmra.mrb[0].mxu0 %v1707
        %v1751 = vpop.f32.mrb[0].mxu0
        %v1752 = vadd.f32 %v1689, %v1751
        %v1753 = vpop.f32.mrb[0].mxu0
        %v1754 = vpop.f32.mrb[0].mxu0
        %v1755 = vadd.f32 %v1689, %v1754
        %v1756 = vpop.f32.mrb[0].mxu0
        %1757 = vdwg.mxu0
        %v1758 = vmax.f32 %v1744, 0.0
        %v1759 = vmax.f32 %v1747, 0.0
        %v1760 = vmax.f32 %v1752, 0.0
        %v1761 = vmax.f32 %v1755, 0.0
        %v1762 = vpack.c.bf16 %v1759, %v1758
        %v1763 = vpack.c.bf16 %v1761, %v1760
        %v1764 = vlaneseq
        %v1765 = vshrl.u32 %v1764, 7
        %v1766 = vsub.s32 3, %v1765
        %v1767 = vrot.slane %v415, %v1766
        %v1776 = vunpack.c.l.b16 %v407
        %v1777 = vunpack.c.l.b16 %v408
        %v1778 = vunpack.c.l.b16 %v409
        %v1779 = vunpack.c.l.b16 %v410
        %v1780 = vunpack.c.l.b16 %v411
        %v1781 = vunpack.c.l.b16 %v412
        %v1782 = vunpack.c.l.b16 %v413
        %v1783 = vunpack.c.l.b16 %v414
        %v1784 = vpack.c.b16 %v1777, %v1776
        %v1785 = vpack.c.b16 %v1779, %v1778
        %v1786 = vpack.c.b16 %v1781, %v1780
        %v1787 = vpack.c.b16 %v1783, %v1782
        %vm1792 = vcmask 523264
        %v1794 = vsel %vm1792, %v1762, 0
        %v1797 = vsel %vm1792, %v1763, 0
        %1799 = vmatprep.subr.bf16.mxu0 0
        %1800 = vmatpush1.bf16.msra.mxu0 %v1784
        %1801 = vmatprep.subr.bf16.mxu0 0
        %1802 = vmatpush1.bf16.msra.mxu0 %v1785
        %1803 = vmatprep.subr.bf16.mxu0 0
        %1804 = vmatpush1.bf16.msra.mxu0 %v1786
        %1805 = vmatprep.subr.bf16.mxu0 0
        %1806 = vmatpush1.bf16.msra.mxu0 %v1787
        %1807 = vmatprep.subr.bf16.mxu0 0
        %1808 = vmatpush1.bf16.msra.mxu0 0
        %1809 = vmatprep.subr.bf16.mxu0 0
        %1810 = vmatpush1.bf16.msra.mxu0 0
        %1811 = vmatprep.subr.bf16.mxu0 0
        %1812 = vmatpush1.bf16.msra.mxu0 0
        %1813 = vmatprep.subr.bf16.mxu0 0
        %1814 = vmatpush1.bf16.msra.mxu0 0
        %1815 = vmatprep.subr.bf16.mxu0 0
        %1816 = vmatpush1.bf16.msra.mxu0 0
        %1817 = vmatprep.subr.bf16.mxu0 0
        %1818 = vmatpush1.bf16.msra.mxu0 0
        %1819 = vmatprep.subr.bf16.mxu0 0
        %1820 = vmatpush1.bf16.msra.mxu0 0
        %1821 = vmatprep.subr.bf16.mxu0 0
        %1822 = vmatpush1.bf16.msra.mxu0 0
        %1823 = vmatprep.subr.bf16.mxu0 0
        %1824 = vmatpush1.bf16.msra.mxu0 0
        %1825 = vmatprep.subr.bf16.mxu0 0
        %1826 = vmatpush1.bf16.msra.mxu0 0
        %1827 = vmatprep.subr.bf16.mxu0 0
        %1828 = vmatpush1.bf16.msra.mxu0 0
        %1829 = vmatprep.subr.bf16.mxu0 0
        %1830 = vmatpush1.bf16.msra.mxu0 0
        %1831 = vmatprep.mubr.bf16.mxu0 0
        %1832 = vmatmul.mubr.bf16.gmra.mrb[0].mxu0 %v1794
        %v1833 = vpop.f32.mrb[0].mxu0
        %v1834 = vadd.f32 %v1767, %v1833
        %v1835 = vpop.f32.mrb[0].mxu0
        %v1836 = vpop.f32.mrb[0].mxu0
        %v1837 = vadd.f32 %v1767, %v1836
        %v1838 = vpop.f32.mrb[0].mxu0
        %1839 = vmatprep.mubr.bf16.mxu0 0
        %1840 = vmatmul.mubr.bf16.gmra.mrb[0].mxu0 %v1797
        %v1841 = vpop.f32.mrb[0].mxu0
        %v1842 = vadd.f32 %v1767, %v1841
        %v1843 = vpop.f32.mrb[0].mxu0
        %v1844 = vpop.f32.mrb[0].mxu0
        %v1845 = vadd.f32 %v1767, %v1844
        %v1846 = vpop.f32.mrb[0].mxu0
        %1847 = vdwg.mxu0
        %v1848 = vadd.f32 %v1679, %v1834
        %v1849 = vadd.f32 %v1680, %v1837
        %v1850 = vadd.f32 %v1681, %v1842
        %v1851 = vadd.f32 %v1682, %v1845
        %v1852 = vsel %vm430, %v1848, 0.0
        %v1853 = vsel %vm430, %v1849, 0.0
        %v1854 = vadd.f32 %v1852, %v1853
        %v1855 = vrot.slane %v1854, 4
        %v1856 = vadd.f32 %v1854, %v1855
        %v1857 = vrot.slane %v1856, 2
        %v1858 = vadd.f32 %v1856, %v1857
        %v1859 = vrot.slane %v1858, 1
        %v1860 = vadd.f32 %v1858, %v1859
        %v1861 = vsel %vm430, %v1850, 0.0
        %v1862 = vsel %vm430, %v1851, 0.0
        %v1863 = vadd.f32 %v1861, %v1862
        %v1864 = vrot.slane %v1863, 4
        %v1865 = vadd.f32 %v1863, %v1864
        %v1866 = vrot.slane %v1865, 2
        %v1867 = vadd.f32 %v1865, %v1866
        %v1868 = vrot.slane %v1867, 1
        %v1869 = vadd.f32 %v1867, %v1868
        %v1870 = vmul.f32 %v1860, %v1628
        %v1871 = vmul.f32 %v1869, %v1628
        %v1872 = vsub.f32 %v1848, %v1870
        %v1873 = vsub.f32 %v1849, %v1870
        %v1874 = vsub.f32 %v1850, %v1871
        %v1875 = vsub.f32 %v1851, %v1871
        %v1876 = vmul.f32 %v1872, %v1872
        %v1877 = vmul.f32 %v1873, %v1873
        %v1878 = vmul.f32 %v1874, %v1874
        %v1879 = vmul.f32 %v1875, %v1875
        %v1880 = vsel %vm430, %v1876, 0.0
        %v1881 = vsel %vm430, %v1877, 0.0
        %v1882 = vadd.f32 %v1880, %v1881
        %v1883 = vrot.slane %v1882, 4
        %v1884 = vadd.f32 %v1882, %v1883
        %v1885 = vrot.slane %v1884, 2
        %v1886 = vadd.f32 %v1884, %v1885
        %v1887 = vrot.slane %v1886, 1
        %v1888 = vadd.f32 %v1886, %v1887
        %v1889 = vsel %vm430, %v1878, 0.0
        %v1890 = vsel %vm430, %v1879, 0.0
        %v1891 = vadd.f32 %v1889, %v1890
        %v1892 = vrot.slane %v1891, 4
        %v1893 = vadd.f32 %v1891, %v1892
        %v1894 = vrot.slane %v1893, 2
        %v1895 = vadd.f32 %v1893, %v1894
        %v1896 = vrot.slane %v1895, 1
        %v1897 = vadd.f32 %v1895, %v1896
        %v1898 = vmul.f32 %v1888, %v1628
        %v1899 = vmul.f32 %v1897, %v1628
        %v1900 = vadd.f32 %v1898, 1e-05
        %v1901 = vadd.f32 %v1899, 1e-05
        %v1902 = vrsqrt.pop %v1900
        %v1903 = vrsqrt.pop %v1901
        %v1904 = vmul.f32 %v1872, %v1902
        %v1905 = vmul.f32 %v1873, %v1902
        %v1906 = vmul.f32 %v1874, %v1903
        %v1907 = vmul.f32 %v1875, %v1903
        %v1908 = vlaneseq
        %v1909 = vshrl.u32 %v1908, 7
        %v1910 = vsub.s32 4, %v1909
        %v1911 = vrot.slane %v415, %v1910
        %v1912 = vmul.f32 %v1904, %v1911
        %v1913 = vmul.f32 %v1905, %v1911
        %v1914 = vmul.f32 %v1906, %v1911
        %v1915 = vmul.f32 %v1907, %v1911
        %v1916 = vlaneseq
        %v1917 = vshrl.u32 %v1916, 7
        %v1918 = vsub.s32 5, %v1917
        %v1919 = vrot.slane %v415, %v1918
        %v1920 = vadd.f32 %v1912, %v1919
        %v1921 = vadd.f32 %v1913, %v1919
        %v1922 = vadd.f32 %v1914, %v1919
        %v1923 = vadd.f32 %v1915, %v1919
        %1924 = vst.msk [vmem:[#allocation2] sm:$0xff] %vm430, %v1920
        %1925 = vst.msk [vmem:[#allocation2 + $0x8] sm:$0xff] %vm430, %v1921
        %1926 = vst.msk [vmem:[#allocation2 + $0x10] sm:$0xff] %vm430, %v1922
        %1927 = vst.msk [vmem:[#allocation2 + $0x18] sm:$0xff] %vm430, %v1923
        %p1928 = scmp.eq.s32.totalorder %s22, 1
        // Predicated region
        $region57: #{tpu_custom_call.1} parent=47 // pred_check
          %p1929 = pneg %p1928
        $region58: #{tpu_custom_call.1} parent=47 // pred_check_branch
          %1931 = sbr.rel (%p1929) target = $region60
        $region59: #{tpu_custom_call.1} parent=47 // pred_region
          %1932 = vst.msk [vmem:[#allocation6] sm:$0xff] %vm430, %v1920
          %1933 = vst.msk [vmem:[#allocation6 + $0x8] sm:$0xff] %vm430, %v1921
          %1934 = vst.msk [vmem:[#allocation6 + $0x10] sm:$0xff] %vm430, %v1922
          %1935 = vst.msk [vmem:[#allocation6 + $0x18] sm:$0xff] %vm430, %v1923
        $region60: #{tpu_custom_call.1} parent=47 // pred_fallthru
          _
        // Predicated region
        $region61: #{tpu_custom_call.1} parent=47 // pred_check
          %p1936 = pneg %p212
        $region62: #{tpu_custom_call.1} parent=47 // pred_check_branch
          %1938 = sbr.rel (%p1936) target = $region64
        $region63: #{tpu_custom_call.1} parent=47 // pred_region
          %s1940 = ssub.s32 512, 512
          %1941 = vsyncadd [#allocation5], %s1940
          %s1942 = sshll.u32 [#allocation6], 4
          %s1943 = int_to_ptr.vmem [resolvable:$true] %s1942
          %1948 = dma.vmem_to_hbm [thread:$0]  %s1943, 512, %s7, [#allocation5], 128, 128, 8
        $region64: #{tpu_custom_call.1} parent=47 // pred_fallthru
          _
        // Predicated region
        $region65: #{tpu_custom_call.1} parent=47 // pred_check
          %p1949 = pneg %p212
        $region66: #{tpu_custom_call.1} parent=47 // pred_check_branch
          %1951 = sbr.rel (%p1949) target = $region68
        $region67: #{tpu_custom_call.1} parent=47 // pred_region
          %1952 = dma.done [#allocation5], 512
        $region68: #{tpu_custom_call.1} parent=47 // pred_fallthru
          _
      $region48: #{tpu_custom_call.1} parent=5 // pred_fallthru
        _
      %p1953 = scmp.le.s32.totalorder 2, %s17
      // Predicated region
      $region69: #{tpu_custom_call.1} parent=5 // pred_check
        %p1954 = pneg %p1953
      $region70: #{tpu_custom_call.1} parent=5 // pred_check_branch
        %1956 = sbr.rel (%p1954) target = $region72
      $region71: #{tpu_custom_call.1} parent=5 // pred_region
        %s1957 = ssub.s32 %s17, 2
      $region72: #{tpu_custom_call.1} parent=5 // pred_fallthru
        _
    $region6: #{tpu_custom_call.1} parent=1 // loop_footer
      %s21 = sadd.s32 1, %s17
    $region7: #{tpu_custom_call.1} parent=1 // loop_footer_branch
      %16 = sbr.rel target = $region3
    $region8: #{tpu_custom_call.1} parent=1 // loop_exit
      _
    %1958 = vsyncpa [#allocation4], 1
    %s1959 = scalar_lea.sflag [#allocation4], 1
    %1960 = vsyncpa %s1959, 1
    %1961 = vsyncpa [#allocation5], 1
    %s1962 = scalar_lea.sflag [#allocation5], 1
    %1963 = vsyncpa %s1962, 1

</llo_original>
